<compile_context>
chip_gen: v7x
topology: tpu7x:2x2x1
jax: 0.10.0
libtpu: 0.0.40
codegen_flags: <defaults>
</compile_context>

<pallas_src>
import functools
import math

import jax
import jax.numpy as jnp
from jax.experimental import pallas as pl
from jax.experimental.pallas import tpu as pltpu


# ---------------------------------------------------------------------------
# Fused kernel: [input-proj + PE (layer 0)] + L x (MHA -> LN1 -> FFN -> LN2)
# ---------------------------------------------------------------------------
def _fused_encoder_kernel(
    src_ref, mask_ref, pe_ref, pw_ref, pb_ref,
    wqkv_ref, bqkv_ref, wo_ref, bo_ref, ln1w_ref, ln1b_ref,
    w1_ref, b1_ref, w2_ref, b2_ref, ln2w_ref, ln2b_ref,
    out_ref,
    x_scr,
    *, num_heads, scale, eps=1e-5,
):
    layer = pl.program_id(1)
    Bt, S, D = x_scr.shape
    Din = src_ref.shape[2]
    H = num_heads
    Dh = D // H
    M = Bt * S
    inv_sqrt_dh = 1.0 / math.sqrt(Dh)

    # ---- layer 0: input projection * sqrt(D) + positional encoding ----
    @pl.when(layer == 0)
    def _():
        s_in = src_ref[...].reshape(M, Din).astype(jnp.bfloat16)       # (M, Din)
        x0 = jnp.dot(s_in, pw_ref[...],
                     preferred_element_type=jnp.float32) + pb_ref[...]
        x0 = x0 * scale                                                # (M, D) f32
        x_scr[...] = x0.reshape(Bt, S, D) + pe_ref[...][None, :, :]

    x = x_scr[...]                                                     # (Bt, S, D) f32
    xf = x.reshape(M, D)
    xb = xf.astype(jnp.bfloat16)

    # ---- fused QKV projection: one (M, D) @ (D, 3D) matmul ----
    qkv = jnp.dot(xb, wqkv_ref[...],
                  preferred_element_type=jnp.float32) + bqkv_ref[...]
    qkv = qkv.astype(jnp.bfloat16)                                     # single bf16 cast
    q = qkv[:, :D]
    k = qkv[:, D:2 * D]
    v = qkv[:, 2 * D:]

    bias = mask_ref[...]                                               # (Bt, 1, S) additive

    # Per-head scores / softmax / PV (statically unrolled; these matmuls are
    # inherently per-head).  Softmax statistics stay in f32.
    ctx_heads = []
    for h in range(H):
        sl = slice(h * Dh, (h + 1) * Dh)
        q_h = q[:, sl].reshape(Bt, S, Dh)
        k_h = k[:, sl].reshape(Bt, S, Dh)
        v_h = v[:, sl].reshape(Bt, S, Dh)
        s_h = jnp.einsum('bqd,bkd->bqk', q_h, k_h,
                         preferred_element_type=jnp.float32) * inv_sqrt_dh
        s_h = s_h + bias
        m_h = jnp.max(s_h, axis=-1, keepdims=True)
        p_h = jnp.exp(s_h - m_h)
        p_h = p_h / jnp.sum(p_h, axis=-1, keepdims=True)               # exact softmax
        c_h = jnp.einsum('bqk,bkd->bqd', p_h.astype(jnp.bfloat16), v_h,
                         preferred_element_type=jnp.float32)           # (Bt, S, Dh)
        ctx_heads.append(c_h.reshape(M, Dh).astype(jnp.bfloat16))

    # head-major merge along the lane dim, then ONE (M, D) @ (D, D) projection
    ctx = jnp.concatenate(ctx_heads, axis=-1)                          # (M, D) bf16
    attn = jnp.dot(ctx, wo_ref[...],
                   preferred_element_type=jnp.float32) + bo_ref[...]   # (M, D) f32

    # ---- residual + LayerNorm 1 (f32) ----
    y = xf + attn
    mu = jnp.mean(y, axis=-1, keepdims=True)
    yc = y - mu
    var = jnp.mean(yc * yc, axis=-1, keepdims=True)
    y = yc * jax.lax.rsqrt(var + eps) * ln1w_ref[...] + ln1b_ref[...]

    # ---- feed-forward (ReLU), bf16 operands, f32 accumulation ----
    h1 = jnp.dot(y.astype(jnp.bfloat16), w1_ref[...],
                 preferred_element_type=jnp.float32) + b1_ref[...]
    h1 = jnp.maximum(h1, 0.0)
    z = jnp.dot(h1.astype(jnp.bfloat16), w2_ref[...],
                preferred_element_type=jnp.float32) + b2_ref[...]

    # ---- residual + LayerNorm 2 (f32) ----
    y2 = y + z
    mu2 = jnp.mean(y2, axis=-1, keepdims=True)
    y2c = y2 - mu2
    var2 = jnp.mean(y2c * y2c, axis=-1, keepdims=True)
    out = y2c * jax.lax.rsqrt(var2 + eps) * ln2w_ref[...] + ln2b_ref[...]

    x_scr[...] = out.reshape(Bt, S, D)                                 # carry to next layer

    @pl.when(layer == pl.num_programs(1) - 1)
    def _():
        out_ref[...] = out.reshape(Bt, S, D)                           # one HBM writeback / block


# ---------------------------------------------------------------------------
# Model wrapper
# ---------------------------------------------------------------------------
def sinusoidal_pe(max_len, d_model):
    position = jnp.arange(max_len, dtype=jnp.float32)[:, None]
    div_term = jnp.exp(
        jnp.arange(0, d_model, 2, dtype=jnp.float32) * (-math.log(10000.0) / d_model))
    pe = jnp.zeros((max_len, d_model), jnp.float32)
    pe = pe.at[:, 0::2].set(jnp.sin(position * div_term))
    pe = pe.at[:, 1::2].set(jnp.cos(position * div_term))
    return pe


def init_params(key, input_dim, model_dim, num_heads, num_layers, dim_ff):
    D, F, L = model_dim, dim_ff, num_layers
    keys = jax.random.split(key, 14)

    def nrm(k, shape, scale=0.02):
        return scale * jax.random.normal(k, shape, jnp.float32)

    wq = nrm(keys[2], (L, D, D))
    wk = nrm(keys[3], (L, D, D))
    wv = nrm(keys[4], (L, D, D))
    bq = nrm(keys[6], (L, 1, D))
    bk = nrm(keys[7], (L, 1, D))
    bv = nrm(keys[8], (L, 1, D))

    # Matmul weights stored bf16 (MXU operands + halved DMA).  Q/K/V are packed
    # host-side into a single (D, 3D) matrix per layer (head-major columns).
    return {
        "proj_w": nrm(keys[0], (input_dim, D)).astype(jnp.bfloat16),
        "proj_b": nrm(keys[1], (1, D)),
        "wqkv": jnp.concatenate([wq, wk, wv], axis=-1).astype(jnp.bfloat16),  # (L, D, 3D)
        "bqkv": jnp.concatenate([bq, bk, bv], axis=-1),                       # (L, 1, 3D)
        "wo": nrm(keys[5], (L, D, D)).astype(jnp.bfloat16),                   # (L, D, D)
        "bo": nrm(keys[9], (L, 1, D)),
        "ln1w": jnp.ones((L, 1, D), jnp.float32),
        "ln1b": jnp.zeros((L, 1, D), jnp.float32),
        "w1": nrm(keys[10], (L, D, F)).astype(jnp.bfloat16),
        "b1": nrm(keys[11], (L, 1, F)),
        "w2": nrm(keys[12], (L, F, D)).astype(jnp.bfloat16),
        "b2": nrm(keys[13], (L, 1, D)),
        "ln2w": jnp.ones((L, 1, D), jnp.float32),
        "ln2b": jnp.zeros((L, 1, D), jnp.float32),
    }


def _choose_batch_block(B):
    # Amortize per-layer weight DMA over several batch rows, but keep >= 2
    # blocks on the "parallel" axis when possible (v7x: 2 TensorCores/chip).
    for bt in (4, 2):
        if B % bt == 0 and B // bt >= 2:
            return bt
    return 1


def stroke_transformer_encoder(src, params, pe, model_dim, num_heads,
                               src_key_padding_mask=None, batch_block=None):
    B, S, Din = src.shape
    D = model_dim
    L = params["wqkv"].shape[0]
    F = params["w1"].shape[-1]
    Bt = _choose_batch_block(B) if batch_block is None else batch_block
    assert B % Bt == 0

    if src_key_padding_mask is None:
        mask_add = jnp.zeros((B, 1, S), jnp.float32)
    else:
        mask_add = jnp.where(src_key_padding_mask, -1e9, 0.0
                             ).astype(jnp.float32).reshape(B, 1, S)

    kernel = functools.partial(_fused_encoder_kernel,
                               num_heads=num_heads, scale=math.sqrt(D))

    # ---- VMEM budget: double-buffered per-layer weights + invariants + live acts,
    # clamped to the real device capacity (v7x: 64 MiB per TensorCore). ----
    M = Bt * S
    per_layer_w = 2 * (D * 3 * D + D * D + 2 * D * F) + 4 * (3 * D + 6 * D + 2 * F)
    invariants = 4 * (Bt * S * Din + Bt * S + S * D + D) + 2 * Din * D
    acts = 4 * (8 * M * D + 2 * M * 3 * D + 3 * num_heads * Bt * S * S + 2 * M * F)
    est = 2 * per_layer_w + 2 * invariants + 2 * 4 * Bt * S * D + acts
    try:
        info = pltpu.get_tpu_info()
        vmem_cap = int(getattr(info, "vmem_capacity_bytes", 64 * 1024 * 1024))
    except Exception:
        vmem_cap = 64 * 1024 * 1024
    vmem_limit = int(max(16 << 20, min(max(32 << 20, 2 * est), vmem_cap - (8 << 20))))

    layer3 = lambda b, l: (l, 0, 0)

    # NOTE: for real benchmarks choose D as a multiple of 128 and Bt*S a multiple
    # of 8 so output stores are lane-dense (unmasked vst); demo shapes are toy.
    return pl.pallas_call(
        kernel,
        out_shape=jax.ShapeDtypeStruct((B, S, D), jnp.float32),
        grid=(B // Bt, L),
        in_specs=[
            pl.BlockSpec((Bt, S, Din), lambda b, l: (b, 0, 0)),   # src
            pl.BlockSpec((Bt, 1, S),   lambda b, l: (b, 0, 0)),   # additive key-padding bias
            pl.BlockSpec((S, D),       lambda b, l: (0, 0)),      # positional encoding
            pl.BlockSpec((Din, D),     lambda b, l: (0, 0)),      # proj W (bf16)
            pl.BlockSpec((1, D),       lambda b, l: (0, 0)),      # proj b
            pl.BlockSpec((None, D, 3 * D), layer3),               # fused qkv W (bf16)
            pl.BlockSpec((None, 1, 3 * D), layer3),               # fused qkv b
            pl.BlockSpec((None, D, D),     layer3),               # out-proj W (bf16)
            pl.BlockSpec((None, 1, D),     layer3),               # out-proj b
            pl.BlockSpec((None, 1, D),     layer3),               # ln1 weight
            pl.BlockSpec((None, 1, D),     layer3),               # ln1 bias
            pl.BlockSpec((None, D, F),     layer3),               # ffn w1 (bf16)
            pl.BlockSpec((None, 1, F),     layer3),               # ffn b1
            pl.BlockSpec((None, F, D),     layer3),               # ffn w2 (bf16)
            pl.BlockSpec((None, 1, D),     layer3),               # ffn b2
            pl.BlockSpec((None, 1, D),     layer3),               # ln2 weight
            pl.BlockSpec((None, 1, D),     layer3),               # ln2 bias
        ],
        out_specs=pl.BlockSpec((Bt, S, D), lambda b, l: (b, 0, 0)),
        scratch_shapes=[pltpu.VMEM((Bt, S, D), jnp.float32)],     # resident activations
        compiler_params=pltpu.CompilerParams(
            dimension_semantics=("parallel", "arbitrary"),
            vmem_limit_bytes=vmem_limit),
    )(
        src, mask_add, pe[:S],
        params["proj_w"], params["proj_b"],
        params["wqkv"], params["bqkv"],
        params["wo"], params["bo"],
        params["ln1w"], params["ln1b"],
        params["w1"], params["b1"], params["w2"], params["b2"],
        params["ln2w"], params["ln2b"],
    )


# ---------------------------------------------------------------------------
if __name__ == "__main__":
    B, S = 2, 8
    input_dim, model_dim = 4, 32
    num_heads, num_layers, dim_ff = 4, 2, 64
    max_seq_len = 512

    key = jax.random.PRNGKey(0)
    k_param, k_src = jax.random.split(key)
    params = init_params(k_param, input_dim, model_dim, num_heads,
                         num_layers, dim_ff)
    pe = sinusoidal_pe(max_seq_len, model_dim)
    src = jax.random.normal(k_src, (B, S, input_dim), jnp.float32)

    out = stroke_transformer_encoder(src, params, pe, model_dim, num_heads,
                                     src_key_padding_mask=None)
    out = jax.block_until_ready(out)
    assert out.shape == (B, S, model_dim)
    assert bool(jnp.all(jnp.isfinite(out)))
    print("KERNEL_OK")
</pallas_src>

<mosaic_0001>
module attributes {stable_mosaic.version = 11 : i64} {
  func.func @_fused_encoder_kernel(%arg0: i32, %arg1: i32, %arg2: memref<1x8x4xf32, #tpu.memory_space<vmem>>, %arg3: memref<1x1x8xf32, #tpu.memory_space<vmem>>, %arg4: memref<8x32xf32, #tpu.memory_space<vmem>>, %arg5: memref<4x32xbf16, #tpu.memory_space<vmem>>, %arg6: memref<1x32xf32, #tpu.memory_space<vmem>>, %arg7: memref<1x32x96xbf16, #tpu.memory_space<vmem>>, %arg8: memref<1x1x96xf32, #tpu.memory_space<vmem>>, %arg9: memref<1x32x32xbf16, #tpu.memory_space<vmem>>, %arg10: memref<1x1x32xf32, #tpu.memory_space<vmem>>, %arg11: memref<1x1x32xf32, #tpu.memory_space<vmem>>, %arg12: memref<1x1x32xf32, #tpu.memory_space<vmem>>, %arg13: memref<1x32x64xbf16, #tpu.memory_space<vmem>>, %arg14: memref<1x1x64xf32, #tpu.memory_space<vmem>>, %arg15: memref<1x64x32xbf16, #tpu.memory_space<vmem>>, %arg16: memref<1x1x32xf32, #tpu.memory_space<vmem>>, %arg17: memref<1x1x32xf32, #tpu.memory_space<vmem>>, %arg18: memref<1x1x32xf32, #tpu.memory_space<vmem>>, %arg19: memref<1x8x32xf32, #tpu.memory_space<vmem>>, %arg20: memref<1x8x32xf32, #tpu.memory_space<vmem>>) attributes {dimension_semantics = [#tpu.dimension_semantics<parallel>, #tpu.dimension_semantics<arbitrary>], iteration_bounds = array<i64: 2, 2>, scalar_prefetch = 0 : i64, scratch_operands = 1 : i64, tpu.core_type = #tpu.core_type<tc>, window_params = [{transform_indices = @transform_0, window_bounds = array<i64: 1, 8, 4>}, {transform_indices = @transform_1, window_bounds = array<i64: 1, 1, 8>}, {pipeline_mode = #tpu.pipeline_mode<synchronous>, transform_indices = @transform_2, window_bounds = array<i64: 8, 32>}, {pipeline_mode = #tpu.pipeline_mode<synchronous>, transform_indices = @transform_3, window_bounds = array<i64: 4, 32>}, {pipeline_mode = #tpu.pipeline_mode<synchronous>, transform_indices = @transform_4, window_bounds = array<i64: 1, 32>}, {transform_indices = @transform_5, window_bounds = array<i64: 1, 32, 96>}, {transform_indices = @transform_6, window_bounds = array<i64: 1, 1, 96>}, {transform_indices = @transform_7, window_bounds = array<i64: 1, 32, 32>}, {transform_indices = @transform_8, window_bounds = array<i64: 1, 1, 32>}, {transform_indices = @transform_9, window_bounds = array<i64: 1, 1, 32>}, {transform_indices = @transform_10, window_bounds = array<i64: 1, 1, 32>}, {transform_indices = @transform_11, window_bounds = array<i64: 1, 32, 64>}, {transform_indices = @transform_12, window_bounds = array<i64: 1, 1, 64>}, {transform_indices = @transform_13, window_bounds = array<i64: 1, 64, 32>}, {transform_indices = @transform_14, window_bounds = array<i64: 1, 1, 32>}, {transform_indices = @transform_15, window_bounds = array<i64: 1, 1, 32>}, {transform_indices = @transform_16, window_bounds = array<i64: 1, 1, 32>}, {transform_indices = @transform_17, window_bounds = array<i64: 1, 8, 32>}]} {
    %c0_i32 = arith.constant 0 : i32
    %0 = arith.cmpi eq, %arg1, %c0_i32 : i32
    %1 = arith.extui %0 : i1 to i32
    %c0_i32_0 = arith.constant 0 : i32
    %2 = arith.cmpi ne, %1, %c0_i32_0 : i32
    scf.if %2 {
      %c0_80 = arith.constant 0 : index
      %c0_81 = arith.constant 0 : index
      %c0_82 = arith.constant 0 : index
      %195 = vector.load %arg2[%c0_80, %c0_81, %c0_82] : memref<1x8x4xf32, #tpu.memory_space<vmem>>, vector<1x8x4xf32>
      %196 = vector.shape_cast %195 : vector<1x8x4xf32> to vector<8x4xf32>
      %197 = arith.truncf %196 : vector<8x4xf32> to vector<8x4xbf16>
      %c0_83 = arith.constant 0 : index
      %c0_84 = arith.constant 0 : index
      %198 = vector.load %arg5[%c0_83, %c0_84] : memref<4x32xbf16, #tpu.memory_space<vmem>>, vector<4x32xbf16>
      %cst_85 = arith.constant dense<0.000000e+00> : vector<8x32xf32>
      %199 = tpu.matmul %197, %198, %cst_85 {dimension_numbers = #tpu.dot_dimension_numbers<[1], [0], [0], [1], [0, 0, 1, 1], [], []>} : vector<8x4xbf16>, vector<4x32xbf16>, vector<8x32xf32> -> vector<8x32xf32>
      %c0_86 = arith.constant 0 : index
      %c0_87 = arith.constant 0 : index
      %200 = vector.load %arg6[%c0_86, %c0_87] : memref<1x32xf32, #tpu.memory_space<vmem>>, vector<1x32xf32>
      %201 = vector.broadcast %200 : vector<1x32xf32> to vector<8x32xf32>
      %202 = arith.addf %199, %201 : vector<8x32xf32>
      %cst_88 = arith.constant 5.65685415 : f32
      %203 = vector.broadcast %cst_88 : f32 to vector<8x32xf32>
      %204 = arith.mulf %202, %203 : vector<8x32xf32>
      %205 = vector.shape_cast %204 : vector<8x32xf32> to vector<1x8x32xf32>
      %c0_89 = arith.constant 0 : index
      %c0_90 = arith.constant 0 : index
      %206 = vector.load %arg4[%c0_89, %c0_90] : memref<8x32xf32, #tpu.memory_space<vmem>>, vector<8x32xf32>
      %207 = vector.shape_cast %206 : vector<8x32xf32> to vector<1x8x32xf32>
      %208 = arith.addf %205, %207 : vector<1x8x32xf32>
      %c0_91 = arith.constant 0 : index
      %c0_92 = arith.constant 0 : index
      %c0_93 = arith.constant 0 : index
      %209 = vector.load %arg20[%c0_91, %c0_92, %c0_93] : memref<1x8x32xf32, #tpu.memory_space<vmem>>, vector<1x8x32xf32>
      tpu.vector_store %arg20[%c0_91, %c0_92, %c0_93], %208 {strides = array<i32>} : memref<1x8x32xf32, #tpu.memory_space<vmem>>, vector<1x8x32xf32>,
    } else {
    }
    %c0 = arith.constant 0 : index
    %c0_1 = arith.constant 0 : index
    %c0_2 = arith.constant 0 : index
    %3 = vector.load %arg20[%c0, %c0_1, %c0_2] : memref<1x8x32xf32, #tpu.memory_space<vmem>>, vector<1x8x32xf32>
    %4 = vector.shape_cast %3 : vector<1x8x32xf32> to vector<8x32xf32>
    %5 = arith.truncf %4 : vector<8x32xf32> to vector<8x32xbf16>
    %c0_3 = arith.constant 0 : index
    %c0_4 = arith.constant 0 : index
    %c0_5 = arith.constant 0 : index
    %6 = vector.load %arg7[%c0_3, %c0_4, %c0_5] : memref<1x32x96xbf16, #tpu.memory_space<vmem>>, vector<1x32x96xbf16>
    %7 = vector.shape_cast %6 : vector<1x32x96xbf16> to vector<32x96xbf16>
    %cst = arith.constant dense<0.000000e+00> : vector<8x96xf32>
    %8 = tpu.matmul %5, %7, %cst {dimension_numbers = #tpu.dot_dimension_numbers<[1], [0], [0], [1], [0, 0, 1, 1], [], []>} : vector<8x32xbf16>, vector<32x96xbf16>, vector<8x96xf32> -> vector<8x96xf32>
    %c0_6 = arith.constant 0 : index
    %c0_7 = arith.constant 0 : index
    %c0_8 = arith.constant 0 : index
    %9 = vector.load %arg8[%c0_6, %c0_7, %c0_8] : memref<1x1x96xf32, #tpu.memory_space<vmem>>, vector<1x1x96xf32>
    %10 = vector.shape_cast %9 : vector<1x1x96xf32> to vector<1x96xf32>
    %11 = vector.broadcast %10 : vector<1x96xf32> to vector<8x96xf32>
    %12 = arith.addf %8, %11 : vector<8x96xf32>
    %13 = arith.truncf %12 : vector<8x96xf32> to vector<8x96xbf16>
    %14 = vector.extract_strided_slice %13 {offsets = [0, 0], sizes = [8, 32], strides = [1, 1]} : vector<8x96xbf16> to vector<8x32xbf16>
    %15 = vector.extract_strided_slice %13 {offsets = [0, 32], sizes = [8, 32], strides = [1, 1]} : vector<8x96xbf16> to vector<8x32xbf16>
    %16 = vector.extract_strided_slice %13 {offsets = [0, 64], sizes = [8, 32], strides = [1, 1]} : vector<8x96xbf16> to vector<8x32xbf16>
    %c0_9 = arith.constant 0 : index
    %c0_10 = arith.constant 0 : index
    %c0_11 = arith.constant 0 : index
    %17 = vector.load %arg3[%c0_9, %c0_10, %c0_11] : memref<1x1x8xf32, #tpu.memory_space<vmem>>, vector<1x1x8xf32>
    %18 = vector.extract_strided_slice %14 {offsets = [0, 0], sizes = [8, 8], strides = [1, 1]} : vector<8x32xbf16> to vector<8x8xbf16>
    %19 = vector.shape_cast %18 : vector<8x8xbf16> to vector<1x8x8xbf16>
    %20 = vector.extract_strided_slice %15 {offsets = [0, 0], sizes = [8, 8], strides = [1, 1]} : vector<8x32xbf16> to vector<8x8xbf16>
    %21 = vector.shape_cast %20 : vector<8x8xbf16> to vector<1x8x8xbf16>
    %22 = vector.extract_strided_slice %16 {offsets = [0, 0], sizes = [8, 8], strides = [1, 1]} : vector<8x32xbf16> to vector<8x8xbf16>
    %23 = vector.shape_cast %22 : vector<8x8xbf16> to vector<1x8x8xbf16>
    "tpu.trace_start"() <{level = 10 : i32, message = "bqd,bkd->bqk"}> : () -> ()
    %cst_12 = arith.constant dense<0.000000e+00> : vector<1x8x8xf32>
    %24 = tpu.matmul %19, %21, %cst_12 {dimension_numbers = #tpu.dot_dimension_numbers<[2], [2], [1], [1], [0, 0, 0, 1, 1, 1], [0], [0]>} : vector<1x8x8xbf16>, vector<1x8x8xbf16>, vector<1x8x8xf32> -> vector<1x8x8xf32>
    "tpu.trace_stop"() : () -> ()
    %cst_13 = arith.constant 0.353553385 : f32
    %25 = vector.broadcast %cst_13 : f32 to vector<1x8x8xf32>
    %26 = arith.mulf %24, %25 : vector<1x8x8xf32>
    %27 = vector.broadcast %17 : vector<1x1x8xf32> to vector<1x8x8xf32>
    %28 = arith.addf %26, %27 : vector<1x8x8xf32>
    %cst_14 = arith.constant dense<0xFF800000> : vector<1x8xf32>
    %29 = vector.multi_reduction <maximumf>, %28, %cst_14 [2] : vector<1x8x8xf32> to vector<1x8xf32>
    %30 = vector.shape_cast %29 : vector<1x8xf32> to vector<1x8x1xf32>
    %31 = vector.broadcast %30 : vector<1x8x1xf32> to vector<1x8x8xf32>
    %32 = arith.subf %28, %31 : vector<1x8x8xf32>
    %33 = math.exp %32 : vector<1x8x8xf32>
    %cst_15 = arith.constant dense<0.000000e+00> : vector<1x8xf32>
    %34 = vector.multi_reduction <add>, %33, %cst_15 [2] : vector<1x8x8xf32> to vector<1x8xf32>
    %35 = vector.shape_cast %34 : vector<1x8xf32> to vector<1x8x1xf32>
    %36 = vector.broadcast %35 : vector<1x8x1xf32> to vector<1x8x8xf32>
    %37 = arith.divf %33, %36 : vector<1x8x8xf32>
    %38 = arith.truncf %37 : vector<1x8x8xf32> to vector<1x8x8xbf16>
    "tpu.trace_start"() <{level = 10 : i32, message = "bqk,bkd->bqd"}> : () -> ()
    %cst_16 = arith.constant dense<0.000000e+00> : vector<1x8x8xf32>
    %39 = tpu.matmul %38, %23, %cst_16 {dimension_numbers = #tpu.dot_dimension_numbers<[2], [1], [1], [2], [0, 0, 0, 1, 1, 2], [0], [0]>} : vector<1x8x8xbf16>, vector<1x8x8xbf16>, vector<1x8x8xf32> -> vector<1x8x8xf32>
    "tpu.trace_stop"() : () -> ()
    %40 = vector.shape_cast %39 : vector<1x8x8xf32> to vector<8x8xf32>
    %41 = arith.truncf %40 : vector<8x8xf32> to vector<8x8xbf16>
    %42 = vector.extract_strided_slice %14 {offsets = [0, 8], sizes = [8, 8], strides = [1, 1]} : vector<8x32xbf16> to vector<8x8xbf16>
    %43 = vector.shape_cast %42 : vector<8x8xbf16> to vector<1x8x8xbf16>
    %44 = vector.extract_strided_slice %15 {offsets = [0, 8], sizes = [8, 8], strides = [1, 1]} : vector<8x32xbf16> to vector<8x8xbf16>
    %45 = vector.shape_cast %44 : vector<8x8xbf16> to vector<1x8x8xbf16>
    %46 = vector.extract_strided_slice %16 {offsets = [0, 8], sizes = [8, 8], strides = [1, 1]} : vector<8x32xbf16> to vector<8x8xbf16>
    %47 = vector.shape_cast %46 : vector<8x8xbf16> to vector<1x8x8xbf16>
    "tpu.trace_start"() <{level = 10 : i32, message = "bqd,bkd->bqk"}> : () -> ()
    %cst_17 = arith.constant dense<0.000000e+00> : vector<1x8x8xf32>
    %48 = tpu.matmul %43, %45, %cst_17 {dimension_numbers = #tpu.dot_dimension_numbers<[2], [2], [1], [1], [0, 0, 0, 1, 1, 1], [0], [0]>} : vector<1x8x8xbf16>, vector<1x8x8xbf16>, vector<1x8x8xf32> -> vector<1x8x8xf32>
    "tpu.trace_stop"() : () -> ()
    %cst_18 = arith.constant 0.353553385 : f32
    %49 = vector.broadcast %cst_18 : f32 to vector<1x8x8xf32>
    %50 = arith.mulf %48, %49 : vector<1x8x8xf32>
    %51 = vector.broadcast %17 : vector<1x1x8xf32> to vector<1x8x8xf32>
    %52 = arith.addf %50, %51 : vector<1x8x8xf32>
    %cst_19 = arith.constant dense<0xFF800000> : vector<1x8xf32>
    %53 = vector.multi_reduction <maximumf>, %52, %cst_19 [2] : vector<1x8x8xf32> to vector<1x8xf32>
    %54 = vector.shape_cast %53 : vector<1x8xf32> to vector<1x8x1xf32>
    %55 = vector.broadcast %54 : vector<1x8x1xf32> to vector<1x8x8xf32>
    %56 = arith.subf %52, %55 : vector<1x8x8xf32>
    %57 = math.exp %56 : vector<1x8x8xf32>
    %cst_20 = arith.constant dense<0.000000e+00> : vector<1x8xf32>
    %58 = vector.multi_reduction <add>, %57, %cst_20 [2] : vector<1x8x8xf32> to vector<1x8xf32>
    %59 = vector.shape_cast %58 : vector<1x8xf32> to vector<1x8x1xf32>
    %60 = vector.broadcast %59 : vector<1x8x1xf32> to vector<1x8x8xf32>
    %61 = arith.divf %57, %60 : vector<1x8x8xf32>
    %62 = arith.truncf %61 : vector<1x8x8xf32> to vector<1x8x8xbf16>
    "tpu.trace_start"() <{level = 10 : i32, message = "bqk,bkd->bqd"}> : () -> ()
    %cst_21 = arith.constant dense<0.000000e+00> : vector<1x8x8xf32>
    %63 = tpu.matmul %62, %47, %cst_21 {dimension_numbers = #tpu.dot_dimension_numbers<[2], [1], [1], [2], [0, 0, 0, 1, 1, 2], [0], [0]>} : vector<1x8x8xbf16>, vector<1x8x8xbf16>, vector<1x8x8xf32> -> vector<1x8x8xf32>
    "tpu.trace_stop"() : () -> ()
    %64 = vector.shape_cast %63 : vector<1x8x8xf32> to vector<8x8xf32>
    %65 = arith.truncf %64 : vector<8x8xf32> to vector<8x8xbf16>
    %66 = vector.extract_strided_slice %14 {offsets = [0, 16], sizes = [8, 8], strides = [1, 1]} : vector<8x32xbf16> to vector<8x8xbf16>
    %67 = vector.shape_cast %66 : vector<8x8xbf16> to vector<1x8x8xbf16>
    %68 = vector.extract_strided_slice %15 {offsets = [0, 16], sizes = [8, 8], strides = [1, 1]} : vector<8x32xbf16> to vector<8x8xbf16>
    %69 = vector.shape_cast %68 : vector<8x8xbf16> to vector<1x8x8xbf16>
    %70 = vector.extract_strided_slice %16 {offsets = [0, 16], sizes = [8, 8], strides = [1, 1]} : vector<8x32xbf16> to vector<8x8xbf16>
    %71 = vector.shape_cast %70 : vector<8x8xbf16> to vector<1x8x8xbf16>
    "tpu.trace_start"() <{level = 10 : i32, message = "bqd,bkd->bqk"}> : () -> ()
    %cst_22 = arith.constant dense<0.000000e+00> : vector<1x8x8xf32>
    %72 = tpu.matmul %67, %69, %cst_22 {dimension_numbers = #tpu.dot_dimension_numbers<[2], [2], [1], [1], [0, 0, 0, 1, 1, 1], [0], [0]>} : vector<1x8x8xbf16>, vector<1x8x8xbf16>, vector<1x8x8xf32> -> vector<1x8x8xf32>
    "tpu.trace_stop"() : () -> ()
    %cst_23 = arith.constant 0.353553385 : f32
    %73 = vector.broadcast %cst_23 : f32 to vector<1x8x8xf32>
    %74 = arith.mulf %72, %73 : vector<1x8x8xf32>
    %75 = vector.broadcast %17 : vector<1x1x8xf32> to vector<1x8x8xf32>
    %76 = arith.addf %74, %75 : vector<1x8x8xf32>
    %cst_24 = arith.constant dense<0xFF800000> : vector<1x8xf32>
    %77 = vector.multi_reduction <maximumf>, %76, %cst_24 [2] : vector<1x8x8xf32> to vector<1x8xf32>
    %78 = vector.shape_cast %77 : vector<1x8xf32> to vector<1x8x1xf32>
    %79 = vector.broadcast %78 : vector<1x8x1xf32> to vector<1x8x8xf32>
    %80 = arith.subf %76, %79 : vector<1x8x8xf32>
    %81 = math.exp %80 : vector<1x8x8xf32>
    %cst_25 = arith.constant dense<0.000000e+00> : vector<1x8xf32>
    %82 = vector.multi_reduction <add>, %81, %cst_25 [2] : vector<1x8x8xf32> to vector<1x8xf32>
    %83 = vector.shape_cast %82 : vector<1x8xf32> to vector<1x8x1xf32>
    %84 = vector.broadcast %83 : vector<1x8x1xf32> to vector<1x8x8xf32>
    %85 = arith.divf %81, %84 : vector<1x8x8xf32>
    %86 = arith.truncf %85 : vector<1x8x8xf32> to vector<1x8x8xbf16>
    "tpu.trace_start"() <{level = 10 : i32, message = "bqk,bkd->bqd"}> : () -> ()
    %cst_26 = arith.constant dense<0.000000e+00> : vector<1x8x8xf32>
    %87 = tpu.matmul %86, %71, %cst_26 {dimension_numbers = #tpu.dot_dimension_numbers<[2], [1], [1], [2], [0, 0, 0, 1, 1, 2], [0], [0]>} : vector<1x8x8xbf16>, vector<1x8x8xbf16>, vector<1x8x8xf32> -> vector<1x8x8xf32>
    "tpu.trace_stop"() : () -> ()
    %88 = vector.shape_cast %87 : vector<1x8x8xf32> to vector<8x8xf32>
    %89 = arith.truncf %88 : vector<8x8xf32> to vector<8x8xbf16>
    %90 = vector.extract_strided_slice %14 {offsets = [0, 24], sizes = [8, 8], strides = [1, 1]} : vector<8x32xbf16> to vector<8x8xbf16>
    %91 = vector.shape_cast %90 : vector<8x8xbf16> to vector<1x8x8xbf16>
    %92 = vector.extract_strided_slice %15 {offsets = [0, 24], sizes = [8, 8], strides = [1, 1]} : vector<8x32xbf16> to vector<8x8xbf16>
    %93 = vector.shape_cast %92 : vector<8x8xbf16> to vector<1x8x8xbf16>
    %94 = vector.extract_strided_slice %16 {offsets = [0, 24], sizes = [8, 8], strides = [1, 1]} : vector<8x32xbf16> to vector<8x8xbf16>
    %95 = vector.shape_cast %94 : vector<8x8xbf16> to vector<1x8x8xbf16>
    "tpu.trace_start"() <{level = 10 : i32, message = "bqd,bkd->bqk"}> : () -> ()
    %cst_27 = arith.constant dense<0.000000e+00> : vector<1x8x8xf32>
    %96 = tpu.matmul %91, %93, %cst_27 {dimension_numbers = #tpu.dot_dimension_numbers<[2], [2], [1], [1], [0, 0, 0, 1, 1, 1], [0], [0]>} : vector<1x8x8xbf16>, vector<1x8x8xbf16>, vector<1x8x8xf32> -> vector<1x8x8xf32>
    "tpu.trace_stop"() : () -> ()
    %cst_28 = arith.constant 0.353553385 : f32
    %97 = vector.broadcast %cst_28 : f32 to vector<1x8x8xf32>
    %98 = arith.mulf %96, %97 : vector<1x8x8xf32>
    %99 = vector.broadcast %17 : vector<1x1x8xf32> to vector<1x8x8xf32>
    %100 = arith.addf %98, %99 : vector<1x8x8xf32>
    %cst_29 = arith.constant dense<0xFF800000> : vector<1x8xf32>
    %101 = vector.multi_reduction <maximumf>, %100, %cst_29 [2] : vector<1x8x8xf32> to vector<1x8xf32>
    %102 = vector.shape_cast %101 : vector<1x8xf32> to vector<1x8x1xf32>
    %103 = vector.broadcast %102 : vector<1x8x1xf32> to vector<1x8x8xf32>
    %104 = arith.subf %100, %103 : vector<1x8x8xf32>
    %105 = math.exp %104 : vector<1x8x8xf32>
    %cst_30 = arith.constant dense<0.000000e+00> : vector<1x8xf32>
    %106 = vector.multi_reduction <add>, %105, %cst_30 [2] : vector<1x8x8xf32> to vector<1x8xf32>
    %107 = vector.shape_cast %106 : vector<1x8xf32> to vector<1x8x1xf32>
    %108 = vector.broadcast %107 : vector<1x8x1xf32> to vector<1x8x8xf32>
    %109 = arith.divf %105, %108 : vector<1x8x8xf32>
    %110 = arith.truncf %109 : vector<1x8x8xf32> to vector<1x8x8xbf16>
    "tpu.trace_start"() <{level = 10 : i32, message = "bqk,bkd->bqd"}> : () -> ()
    %cst_31 = arith.constant dense<0.000000e+00> : vector<1x8x8xf32>
    %111 = tpu.matmul %110, %95, %cst_31 {dimension_numbers = #tpu.dot_dimension_numbers<[2], [1], [1], [2], [0, 0, 0, 1, 1, 2], [0], [0]>} : vector<1x8x8xbf16>, vector<1x8x8xbf16>, vector<1x8x8xf32> -> vector<1x8x8xf32>
    "tpu.trace_stop"() : () -> ()
    %112 = vector.shape_cast %111 : vector<1x8x8xf32> to vector<8x8xf32>
    %113 = arith.truncf %112 : vector<8x8xf32> to vector<8x8xbf16>
    %114 = tpu.concatenate %41, %65, %89, %113 in 1 : vector<8x8xbf16>, vector<8x8xbf16>, vector<8x8xbf16>, vector<8x8xbf16> -> vector<8x32xbf16>
    %c0_32 = arith.constant 0 : index
    %c0_33 = arith.constant 0 : index
    %c0_34 = arith.constant 0 : index
    %115 = vector.load %arg9[%c0_32, %c0_33, %c0_34] : memref<1x32x32xbf16, #tpu.memory_space<vmem>>, vector<1x32x32xbf16>
    %116 = vector.shape_cast %115 : vector<1x32x32xbf16> to vector<32x32xbf16>
    %cst_35 = arith.constant dense<0.000000e+00> : vector<8x32xf32>
    %117 = tpu.matmul %114, %116, %cst_35 {dimension_numbers = #tpu.dot_dimension_numbers<[1], [0], [0], [1], [0, 0, 1, 1], [], []>} : vector<8x32xbf16>, vector<32x32xbf16>, vector<8x32xf32> -> vector<8x32xf32>
    %c0_36 = arith.constant 0 : index
    %c0_37 = arith.constant 0 : index
    %c0_38 = arith.constant 0 : index
    %118 = vector.load %arg10[%c0_36, %c0_37, %c0_38] : memref<1x1x32xf32, #tpu.memory_space<vmem>>, vector<1x1x32xf32>
    %119 = vector.shape_cast %118 : vector<1x1x32xf32> to vector<1x32xf32>
    %120 = vector.broadcast %119 : vector<1x32xf32> to vector<8x32xf32>
    %121 = arith.addf %117, %120 : vector<8x32xf32>
    %122 = arith.addf %4, %121 : vector<8x32xf32>
    %cst_39 = arith.constant dense<0.000000e+00> : vector<8xf32>
    %123 = vector.multi_reduction <add>, %122, %cst_39 [1] : vector<8x32xf32> to vector<8xf32>
    %124 = vector.shape_cast %123 : vector<8xf32> to vector<8x1xf32>
    %cst_40 = arith.constant 3.200000e+01 : f32
    %125 = vector.broadcast %cst_40 : f32 to vector<8x1xf32>
    %126 = arith.divf %124, %125 : vector<8x1xf32>
    %127 = vector.broadcast %126 : vector<8x1xf32> to vector<8x32xf32>
    %128 = arith.subf %122, %127 : vector<8x32xf32>
    %129 = arith.mulf %128, %128 : vector<8x32xf32>
    %cst_41 = arith.constant dense<0.000000e+00> : vector<8xf32>
    %130 = vector.multi_reduction <add>, %129, %cst_41 [1] : vector<8x32xf32> to vector<8xf32>
    %131 = vector.shape_cast %130 : vector<8xf32> to vector<8x1xf32>
    %cst_42 = arith.constant 3.200000e+01 : f32
    %132 = vector.broadcast %cst_42 : f32 to vector<8x1xf32>
    %133 = arith.divf %131, %132 : vector<8x1xf32>
    %cst_43 = arith.constant 9.99999974E-6 : f32
    %134 = vector.broadcast %cst_43 : f32 to vector<8x1xf32>
    %135 = arith.addf %133, %134 : vector<8x1xf32>
    %136 = math.rsqrt %135 : vector<8x1xf32>
    %137 = vector.broadcast %136 : vector<8x1xf32> to vector<8x32xf32>
    %138 = arith.mulf %128, %137 : vector<8x32xf32>
    %c0_44 = arith.constant 0 : index
    %c0_45 = arith.constant 0 : index
    %c0_46 = arith.constant 0 : index
    %139 = vector.load %arg11[%c0_44, %c0_45, %c0_46] : memref<1x1x32xf32, #tpu.memory_space<vmem>>, vector<1x1x32xf32>
    %140 = vector.shape_cast %139 : vector<1x1x32xf32> to vector<1x32xf32>
    %141 = vector.broadcast %140 : vector<1x32xf32> to vector<8x32xf32>
    %142 = arith.mulf %138, %141 : vector<8x32xf32>
    %c0_47 = arith.constant 0 : index
    %c0_48 = arith.constant 0 : index
    %c0_49 = arith.constant 0 : index
    %143 = vector.load %arg12[%c0_47, %c0_48, %c0_49] : memref<1x1x32xf32, #tpu.memory_space<vmem>>, vector<1x1x32xf32>
    %144 = vector.shape_cast %143 : vector<1x1x32xf32> to vector<1x32xf32>
    %145 = vector.broadcast %144 : vector<1x32xf32> to vector<8x32xf32>
    %146 = arith.addf %142, %145 : vector<8x32xf32>
    %147 = arith.truncf %146 : vector<8x32xf32> to vector<8x32xbf16>
    %c0_50 = arith.constant 0 : index
    %c0_51 = arith.constant 0 : index
    %c0_52 = arith.constant 0 : index
    %148 = vector.load %arg13[%c0_50, %c0_51, %c0_52] : memref<1x32x64xbf16, #tpu.memory_space<vmem>>, vector<1x32x64xbf16>
    %149 = vector.shape_cast %148 : vector<1x32x64xbf16> to vector<32x64xbf16>
    %cst_53 = arith.constant dense<0.000000e+00> : vector<8x64xf32>
    %150 = tpu.matmul %147, %149, %cst_53 {dimension_numbers = #tpu.dot_dimension_numbers<[1], [0], [0], [1], [0, 0, 1, 1], [], []>} : vector<8x32xbf16>, vector<32x64xbf16>, vector<8x64xf32> -> vector<8x64xf32>
    %c0_54 = arith.constant 0 : index
    %c0_55 = arith.constant 0 : index
    %c0_56 = arith.constant 0 : index
    %151 = vector.load %arg14[%c0_54, %c0_55, %c0_56] : memref<1x1x64xf32, #tpu.memory_space<vmem>>, vector<1x1x64xf32>
    %152 = vector.shape_cast %151 : vector<1x1x64xf32> to vector<1x64xf32>
    %153 = vector.broadcast %152 : vector<1x64xf32> to vector<8x64xf32>
    %154 = arith.addf %150, %153 : vector<8x64xf32>
    %cst_57 = arith.constant 0.000000e+00 : f32
    %155 = vector.broadcast %cst_57 : f32 to vector<8x64xf32>
    %156 = arith.maximumf %154, %155 : vector<8x64xf32>
    %157 = arith.truncf %156 : vector<8x64xf32> to vector<8x64xbf16>
    %c0_58 = arith.constant 0 : index
    %c0_59 = arith.constant 0 : index
    %c0_60 = arith.constant 0 : index
    %158 = vector.load %arg15[%c0_58, %c0_59, %c0_60] : memref<1x64x32xbf16, #tpu.memory_space<vmem>>, vector<1x64x32xbf16>
    %159 = vector.shape_cast %158 : vector<1x64x32xbf16> to vector<64x32xbf16>
    %cst_61 = arith.constant dense<0.000000e+00> : vector<8x32xf32>
    %160 = tpu.matmul %157, %159, %cst_61 {dimension_numbers = #tpu.dot_dimension_numbers<[1], [0], [0], [1], [0, 0, 1, 1], [], []>} : vector<8x64xbf16>, vector<64x32xbf16>, vector<8x32xf32> -> vector<8x32xf32>
    %c0_62 = arith.constant 0 : index
    %c0_63 = arith.constant 0 : index
    %c0_64 = arith.constant 0 : index
    %161 = vector.load %arg16[%c0_62, %c0_63, %c0_64] : memref<1x1x32xf32, #tpu.memory_space<vmem>>, vector<1x1x32xf32>
    %162 = vector.shape_cast %161 : vector<1x1x32xf32> to vector<1x32xf32>
    %163 = vector.broadcast %162 : vector<1x32xf32> to vector<8x32xf32>
    %164 = arith.addf %160, %163 : vector<8x32xf32>
    %165 = arith.addf %146, %164 : vector<8x32xf32>
    %cst_65 = arith.constant dense<0.000000e+00> : vector<8xf32>
    %166 = vector.multi_reduction <add>, %165, %cst_65 [1] : vector<8x32xf32> to vector<8xf32>
    %167 = vector.shape_cast %166 : vector<8xf32> to vector<8x1xf32>
    %cst_66 = arith.constant 3.200000e+01 : f32
    %168 = vector.broadcast %cst_66 : f32 to vector<8x1xf32>
    %169 = arith.divf %167, %168 : vector<8x1xf32>
    %170 = vector.broadcast %169 : vector<8x1xf32> to vector<8x32xf32>
    %171 = arith.subf %165, %170 : vector<8x32xf32>
    %172 = arith.mulf %171, %171 : vector<8x32xf32>
    %cst_67 = arith.constant dense<0.000000e+00> : vector<8xf32>
    %173 = vector.multi_reduction <add>, %172, %cst_67 [1] : vector<8x32xf32> to vector<8xf32>
    %174 = vector.shape_cast %173 : vector<8xf32> to vector<8x1xf32>
    %cst_68 = arith.constant 3.200000e+01 : f32
    %175 = vector.broadcast %cst_68 : f32 to vector<8x1xf32>
    %176 = arith.divf %174, %175 : vector<8x1xf32>
    %cst_69 = arith.constant 9.99999974E-6 : f32
    %177 = vector.broadcast %cst_69 : f32 to vector<8x1xf32>
    %178 = arith.addf %176, %177 : vector<8x1xf32>
    %179 = math.rsqrt %178 : vector<8x1xf32>
    %180 = vector.broadcast %179 : vector<8x1xf32> to vector<8x32xf32>
    %181 = arith.mulf %171, %180 : vector<8x32xf32>
    %c0_70 = arith.constant 0 : index
    %c0_71 = arith.constant 0 : index
    %c0_72 = arith.constant 0 : index
    %182 = vector.load %arg17[%c0_70, %c0_71, %c0_72] : memref<1x1x32xf32, #tpu.memory_space<vmem>>, vector<1x1x32xf32>
    %183 = vector.shape_cast %182 : vector<1x1x32xf32> to vector<1x32xf32>
    %184 = vector.broadcast %183 : vector<1x32xf32> to vector<8x32xf32>
    %185 = arith.mulf %181, %184 : vector<8x32xf32>
    %c0_73 = arith.constant 0 : index
    %c0_74 = arith.constant 0 : index
    %c0_75 = arith.constant 0 : index
    %186 = vector.load %arg18[%c0_73, %c0_74, %c0_75] : memref<1x1x32xf32, #tpu.memory_space<vmem>>, vector<1x1x32xf32>
    %187 = vector.shape_cast %186 : vector<1x1x32xf32> to vector<1x32xf32>
    %188 = vector.broadcast %187 : vector<1x32xf32> to vector<8x32xf32>
    %189 = arith.addf %185, %188 : vector<8x32xf32>
    %190 = vector.shape_cast %189 : vector<8x32xf32> to vector<1x8x32xf32>
    %c0_76 = arith.constant 0 : index
    %c0_77 = arith.constant 0 : index
    %c0_78 = arith.constant 0 : index
    %191 = vector.load %arg20[%c0_76, %c0_77, %c0_78] : memref<1x8x32xf32, #tpu.memory_space<vmem>>, vector<1x8x32xf32>
    tpu.vector_store %arg20[%c0_76, %c0_77, %c0_78], %190 {strides = array<i32>} : memref<1x8x32xf32, #tpu.memory_space<vmem>>, vector<1x8x32xf32>,
    %c1_i32 = arith.constant 1 : i32
    %192 = arith.cmpi eq, %arg1, %c1_i32 : i32
    %193 = arith.extui %192 : i1 to i32
    %c0_i32_79 = arith.constant 0 : i32
    %194 = arith.cmpi ne, %193, %c0_i32_79 : i32
    scf.if %194 {
      %195 = vector.shape_cast %189 : vector<8x32xf32> to vector<1x8x32xf32>
      %c0_80 = arith.constant 0 : index
      %c0_81 = arith.constant 0 : index
      %c0_82 = arith.constant 0 : index
      %196 = vector.load %arg19[%c0_80, %c0_81, %c0_82] : memref<1x8x32xf32, #tpu.memory_space<vmem>>, vector<1x8x32xf32>
      tpu.vector_store %arg19[%c0_80, %c0_81, %c0_82], %195 {strides = array<i32>} : memref<1x8x32xf32, #tpu.memory_space<vmem>>, vector<1x8x32xf32>,
    } else {
    }
    return
  }
  func.func @transform_0(%arg0: i32, %arg1: i32) -> (i32, i32, i32) {
    %c0_i32 = arith.constant 0 : i32
    %c0_i32_0 = arith.constant 0 : i32
    %c0_i32_1 = arith.constant 0 : i32
    return %arg0, %c0_i32, %c0_i32_0 : i32, i32, i32
  }
  func.func @transform_1(%arg0: i32, %arg1: i32) -> (i32, i32, i32) {
    %c0_i32 = arith.constant 0 : i32
    %c0_i32_0 = arith.constant 0 : i32
    %c0_i32_1 = arith.constant 0 : i32
    return %arg0, %c0_i32, %c0_i32_0 : i32, i32, i32
  }
  func.func @transform_2(%arg0: i32, %arg1: i32) -> (i32, i32) {
    %c0_i32 = arith.constant 0 : i32
    %c0_i32_0 = arith.constant 0 : i32
    %c0_i32_1 = arith.constant 0 : i32
    return %c0_i32, %c0_i32_0 : i32, i32
  }
  func.func @transform_3(%arg0: i32, %arg1: i32) -> (i32, i32) {
    %c0_i32 = arith.constant 0 : i32
    %c0_i32_0 = arith.constant 0 : i32
    %c0_i32_1 = arith.constant 0 : i32
    return %c0_i32, %c0_i32_0 : i32, i32
  }
  func.func @transform_4(%arg0: i32, %arg1: i32) -> (i32, i32) {
    %c0_i32 = arith.constant 0 : i32
    %c0_i32_0 = arith.constant 0 : i32
    %c0_i32_1 = arith.constant 0 : i32
    return %c0_i32, %c0_i32_0 : i32, i32
  }
  func.func @transform_5(%arg0: i32, %arg1: i32) -> (i32, i32, i32) {
    %c0_i32 = arith.constant 0 : i32
    %c0_i32_0 = arith.constant 0 : i32
    %c0_i32_1 = arith.constant 0 : i32
    return %arg1, %c0_i32, %c0_i32_0 : i32, i32, i32
  }
  func.func @transform_6(%arg0: i32, %arg1: i32) -> (i32, i32, i32) {
    %c0_i32 = arith.constant 0 : i32
    %c0_i32_0 = arith.constant 0 : i32
    %c0_i32_1 = arith.constant 0 : i32
    return %arg1, %c0_i32, %c0_i32_0 : i32, i32, i32
  }
  func.func @transform_7(%arg0: i32, %arg1: i32) -> (i32, i32, i32) {
    %c0_i32 = arith.constant 0 : i32
    %c0_i32_0 = arith.constant 0 : i32
    %c0_i32_1 = arith.constant 0 : i32
    return %arg1, %c0_i32, %c0_i32_0 : i32, i32, i32
  }
  func.func @transform_8(%arg0: i32, %arg1: i32) -> (i32, i32, i32) {
    %c0_i32 = arith.constant 0 : i32
    %c0_i32_0 = arith.constant 0 : i32
    %c0_i32_1 = arith.constant 0 : i32
    return %arg1, %c0_i32, %c0_i32_0 : i32, i32, i32
  }
  func.func @transform_9(%arg0: i32, %arg1: i32) -> (i32, i32, i32) {
    %c0_i32 = arith.constant 0 : i32
    %c0_i32_0 = arith.constant 0 : i32
    %c0_i32_1 = arith.constant 0 : i32
    return %arg1, %c0_i32, %c0_i32_0 : i32, i32, i32
  }
  func.func @transform_10(%arg0: i32, %arg1: i32) -> (i32, i32, i32) {
    %c0_i32 = arith.constant 0 : i32
    %c0_i32_0 = arith.constant 0 : i32
    %c0_i32_1 = arith.constant 0 : i32
    return %arg1, %c0_i32, %c0_i32_0 : i32, i32, i32
  }
  func.func @transform_11(%arg0: i32, %arg1: i32) -> (i32, i32, i32) {
    %c0_i32 = arith.constant 0 : i32
    %c0_i32_0 = arith.constant 0 : i32
    %c0_i32_1 = arith.constant 0 : i32
    return %arg1, %c0_i32, %c0_i32_0 : i32, i32, i32
  }
  func.func @transform_12(%arg0: i32, %arg1: i32) -> (i32, i32, i32) {
    %c0_i32 = arith.constant 0 : i32
    %c0_i32_0 = arith.constant 0 : i32
    %c0_i32_1 = arith.constant 0 : i32
    return %arg1, %c0_i32, %c0_i32_0 : i32, i32, i32
  }
  func.func @transform_13(%arg0: i32, %arg1: i32) -> (i32, i32, i32) {
    %c0_i32 = arith.constant 0 : i32
    %c0_i32_0 = arith.constant 0 : i32
    %c0_i32_1 = arith.constant 0 : i32
    return %arg1, %c0_i32, %c0_i32_0 : i32, i32, i32
  }
  func.func @transform_14(%arg0: i32, %arg1: i32) -> (i32, i32, i32) {
    %c0_i32 = arith.constant 0 : i32
    %c0_i32_0 = arith.constant 0 : i32
    %c0_i32_1 = arith.constant 0 : i32
    return %arg1, %c0_i32, %c0_i32_0 : i32, i32, i32
  }
  func.func @transform_15(%arg0: i32, %arg1: i32) -> (i32, i32, i32) {
    %c0_i32 = arith.constant 0 : i32
    %c0_i32_0 = arith.constant 0 : i32
    %c0_i32_1 = arith.constant 0 : i32
    return %arg1, %c0_i32, %c0_i32_0 : i32, i32, i32
  }
  func.func @transform_16(%arg0: i32, %arg1: i32) -> (i32, i32, i32) {
    %c0_i32 = arith.constant 0 : i32
    %c0_i32_0 = arith.constant 0 : i32
    %c0_i32_1 = arith.constant 0 : i32
    return %arg1, %c0_i32, %c0_i32_0 : i32, i32, i32
  }
  func.func @transform_17(%arg0: i32, %arg1: i32) -> (i32, i32, i32) {
    %c0_i32 = arith.constant 0 : i32
    %c0_i32_0 = arith.constant 0 : i32
    %c0_i32_1 = arith.constant 0 : i32
    return %arg0, %c0_i32, %c0_i32_0 : i32, i32, i32
  }
}

</mosaic_0001>

<llo_original>
// kernel: tpu_custom_call.1
$region0: #{tpu_custom_call.1}
  #allocation0 [shape = 'u32[]', space=smem, size = 0x4, offset = 0x4, fixed_abs, tag = 'smem constant byte address 0x4 - core index']
  #allocation1 [shape = 'u32[144,128]{1,0:T(1,128)}', space=vmem, size = 0x12000, scoped, tag = 'internal scratch']
  #allocation2 [shape = 'f32[1,8,32]{2,1,0:T(8,128)}', space=vmem, size = 0x1000, scoped, tag = 'scratch operand']
  %s0 = inlined_call_operand.vmem [shape: f32[2,8,4], index: 0, kind: input, shape index: {}]
  %s1 = inlined_call_operand.vmem [shape: f32[2,1,8], index: 1, kind: input, shape index: {}]
  %s2 = inlined_call_operand.vmem [shape: f32[8,32], index: 2, kind: input, shape index: {}]
  %s3 = inlined_call_operand.vmem [shape: bf16[4,32], index: 3, kind: input, shape index: {}]
  %s4 = inlined_call_operand.vmem [shape: f32[1,32], index: 4, kind: input, shape index: {}]
  %s5 = inlined_call_operand.vmem [shape: bf16[2,32,96], index: 5, kind: input, shape index: {}]
  %s6 = inlined_call_operand.vmem [shape: f32[2,1,96], index: 6, kind: input, shape index: {}]
  %s7 = inlined_call_operand.vmem [shape: bf16[2,32,32], index: 7, kind: input, shape index: {}]
  %s8 = inlined_call_operand.vmem [shape: f32[2,1,32], index: 8, kind: input, shape index: {}]
  %s9 = inlined_call_operand.vmem [shape: f32[2,1,32], index: 9, kind: input, shape index: {}]
  %s10 = inlined_call_operand.vmem [shape: f32[2,1,32], index: 10, kind: input, shape index: {}]
  %s11 = inlined_call_operand.vmem [shape: bf16[2,32,64], index: 11, kind: input, shape index: {}]
  %s12 = inlined_call_operand.vmem [shape: f32[2,1,64], index: 12, kind: input, shape index: {}]
  %s13 = inlined_call_operand.vmem [shape: bf16[2,64,32], index: 13, kind: input, shape index: {}]
  %s14 = inlined_call_operand.vmem [shape: f32[2,1,32], index: 14, kind: input, shape index: {}]
  %s15 = inlined_call_operand.vmem [shape: f32[2,1,32], index: 15, kind: input, shape index: {}]
  %s16 = inlined_call_operand.vmem [shape: f32[2,1,32], index: 16, kind: input, shape index: {}]
  %s17 = inlined_call_operand.hbm [shape: f32[2,8,32], index: 17, kind: output, shape index: {}]
  %s18 = sld [smem:[#allocation0]]
  $region109: #{tpu_custom_call.1} parent=0
    _
  %s20 = ssub.s32 1, %s18
  %s21 = scalar_select 0, %s20, %s18
  $region1: #{tpu_custom_call.1} parent=0
    #allocation3 [shape = 'u8[8192]{0}', space=vmem, size = 0x2000, scoped, tag = 'output window, operand 0']
    #allocation4 [shape = 's32[2]{0}', space=sflag, size = 0x8, scoped, tag = 'scoped memory for tpu_custom_call.1']
    %22 = vsyncpa [#allocation4], 0
    %s23 = scalar_lea.sflag [#allocation4], 1
    %24 = vsyncpa %s23, 0
    loop: start=0, step=1, limit=6
    $region2: #{tpu_custom_call.1} parent=1 // loop_pre_header
      _
    $region3: #{tpu_custom_call.1} parent=1 // loop_header
      %s26 = sphi 0, %s30
      %p27 = scmp.ge.s32.totalorder %s26, 6
      %s33 = sphi 0, %s45
      %s34 = sphi 0, %s41
      %s35 = sphi 0, %s33
      %s36 = sphi 0, %s34
      %s37 = sphi 0, %s35
      %s38 = sphi 0, %s36
      %s48 = sphi 0, %s50
      %s51 = sphi 0, %s48
      %s52 = sphi 0, %s51
      %s68 = sphi 0, %s52
      %s74 = sphi 0, %s76
      %s77 = sphi 0, %s74
      %s78 = sphi 0, %s77
      %s94 = sphi 0, %s78
      %s98 = sphi 0, %s98
      %s100 = sphi 0, %s98
      %s101 = sphi 0, %s100
      %s115 = sphi 0, %s101
      %s119 = sphi 0, %s119
      %s121 = sphi 0, %s119
      %s122 = sphi 0, %s121
      %s136 = sphi 0, %s122
      %s140 = sphi 0, %s140
      %s142 = sphi 0, %s140
      %s143 = sphi 0, %s142
      %s157 = sphi 0, %s143
      %s163 = sphi 0, %s165
      %s166 = sphi 0, %s163
      %s167 = sphi 0, %s166
      %s183 = sphi 0, %s167
      %s189 = sphi 0, %s191
      %s192 = sphi 0, %s189
      %s193 = sphi 0, %s192
      %s209 = sphi 0, %s193
      %s215 = sphi 0, %s217
      %s218 = sphi 0, %s215
      %s219 = sphi 0, %s218
      %s235 = sphi 0, %s219
      %s241 = sphi 0, %s243
      %s244 = sphi 0, %s241
      %s245 = sphi 0, %s244
      %s261 = sphi 0, %s245
      %s267 = sphi 0, %s269
      %s270 = sphi 0, %s267
      %s271 = sphi 0, %s270
      %s287 = sphi 0, %s271
      %s293 = sphi 0, %s295
      %s296 = sphi 0, %s293
      %s297 = sphi 0, %s296
      %s313 = sphi 0, %s297
      %s319 = sphi 0, %s321
      %s322 = sphi 0, %s319
      %s323 = sphi 0, %s322
      %s339 = sphi 0, %s323
      %s345 = sphi 0, %s347
      %s348 = sphi 0, %s345
      %s349 = sphi 0, %s348
      %s365 = sphi 0, %s349
      %s371 = sphi 0, %s373
      %s374 = sphi 0, %s371
      %s375 = sphi 0, %s374
      %s391 = sphi 0, %s375
      %s397 = sphi 0, %s399
      %s400 = sphi 0, %s397
      %s401 = sphi 0, %s400
      %s417 = sphi 0, %s401
      %s423 = sphi 0, %s425
      %s426 = sphi 0, %s423
      %s427 = sphi 0, %s426
      %s443 = sphi 0, %s427
      %s449 = sphi 0, %s451
      %s452 = sphi 0, %s449
      %s453 = sphi 0, %s452
      %s469 = sphi 0, %s453
      %s475 = sphi 0, %s477
      %s478 = sphi 0, %s475
      %s479 = sphi 0, %s478
      %s495 = sphi 0, %s479
    $region4: #{tpu_custom_call.1} parent=1 // loop_header_branch
      %29 = sbr.rel (%p27) target = $region8
    $region5: #{tpu_custom_call.1} parent=1 // loop_body
      %s31 = ssub.s32 %s26, 1
      %s32 = ssub.s32 %s26, 2
      %s39 = sadd.s32 1, %s34
      %p40 = scmp.ge.s32.totalorder %s39, 2
      %s41 = scalar_select %p40, 0, %s39
      %s42 = sadd.s32 1, %s33
      %s43 = scalar_select %p40, %s42, %s33
      %p44 = scmp.ge.s32.totalorder %s43, 2
      %s45 = scalar_select %p44, 0, %s43
      %s46 = ssub.s32 %s33, %s45
      %p47 = scmp.eq.s32.totalorder %s46, 0
      %s49 = sadd.s32 %s48, 1
      %s50 = scalar_select %p47, %s48, %s49
      %p53 = pneg %p47
      %p54 = scmp.eq.s32.totalorder %s26, 3
      %p55 = por %p53, %p54
      %p56 = scmp.ne.s32.totalorder %s48, %s51
      %p57 = scmp.eq.s32.totalorder %s26, 0
      %p58 = por %p56, %p57
      %p59 = scmp.ne.s32.totalorder %s48, %s51
      %p60 = scmp.eq.s32.totalorder %s31, 3
      %p61 = por %p59, %p60
      %p62 = scmp.ne.s32.totalorder %s51, %s52
      %p63 = scmp.eq.s32.totalorder %s31, 0
      %p64 = por %p62, %p63
      %p65 = scmp.ne.s32.totalorder %s51, %s52
      %p66 = scmp.eq.s32.totalorder %s32, 3
      %p67 = por %p65, %p66
      %p69 = scmp.ne.s32.totalorder %s52, %s68
      %p70 = scmp.eq.s32.totalorder %s32, 0
      %p71 = por %p69, %p70
      %s72 = ssub.s32 %s33, %s45
      %p73 = scmp.eq.s32.totalorder %s72, 0
      %s75 = sadd.s32 %s74, 1
      %s76 = scalar_select %p73, %s74, %s75
      %p79 = pneg %p73
      %p80 = scmp.eq.s32.totalorder %s26, 3
      %p81 = por %p79, %p80
      %p82 = scmp.ne.s32.totalorder %s74, %s77
      %p83 = scmp.eq.s32.totalorder %s26, 0
      %p84 = por %p82, %p83
      %p85 = scmp.ne.s32.totalorder %s74, %s77
      %p86 = scmp.eq.s32.totalorder %s31, 3
      %p87 = por %p85, %p86
      %p88 = scmp.ne.s32.totalorder %s77, %s78
      %p89 = scmp.eq.s32.totalorder %s31, 0
      %p90 = por %p88, %p89
      %p91 = scmp.ne.s32.totalorder %s77, %s78
      %p92 = scmp.eq.s32.totalorder %s32, 3
      %p93 = por %p91, %p92
      %p95 = scmp.ne.s32.totalorder %s78, %s94
      %p96 = scmp.eq.s32.totalorder %s32, 0
      %p97 = por %p95, %p96
      %s99 = sadd.s32 %s98, 1
      %p102 = scmp.eq.s32.totalorder %s26, 3
      %p103 = scmp.ne.s32.totalorder %s98, %s100
      %p104 = scmp.eq.s32.totalorder %s26, 0
      %p105 = por %p103, %p104
      %p106 = scmp.ne.s32.totalorder %s98, %s100
      %p107 = scmp.eq.s32.totalorder %s31, 3
      %p108 = por %p106, %p107
      %p109 = scmp.ne.s32.totalorder %s100, %s101
      %p110 = scmp.eq.s32.totalorder %s31, 0
      %p111 = por %p109, %p110
      %p112 = scmp.ne.s32.totalorder %s100, %s101
      %p113 = scmp.eq.s32.totalorder %s32, 3
      %p114 = por %p112, %p113
      %p116 = scmp.ne.s32.totalorder %s101, %s115
      %p117 = scmp.eq.s32.totalorder %s32, 0
      %p118 = por %p116, %p117
      %s120 = sadd.s32 %s119, 1
      %p123 = scmp.eq.s32.totalorder %s26, 3
      %p124 = scmp.ne.s32.totalorder %s119, %s121
      %p125 = scmp.eq.s32.totalorder %s26, 0
      %p126 = por %p124, %p125
      %p127 = scmp.ne.s32.totalorder %s119, %s121
      %p128 = scmp.eq.s32.totalorder %s31, 3
      %p129 = por %p127, %p128
      %p130 = scmp.ne.s32.totalorder %s121, %s122
      %p131 = scmp.eq.s32.totalorder %s31, 0
      %p132 = por %p130, %p131
      %p133 = scmp.ne.s32.totalorder %s121, %s122
      %p134 = scmp.eq.s32.totalorder %s32, 3
      %p135 = por %p133, %p134
      %p137 = scmp.ne.s32.totalorder %s122, %s136
      %p138 = scmp.eq.s32.totalorder %s32, 0
      %p139 = por %p137, %p138
      %s141 = sadd.s32 %s140, 1
      %p144 = scmp.eq.s32.totalorder %s26, 3
      %p145 = scmp.ne.s32.totalorder %s140, %s142
      %p146 = scmp.eq.s32.totalorder %s26, 0
      %p147 = por %p145, %p146
      %p148 = scmp.ne.s32.totalorder %s140, %s142
      %p149 = scmp.eq.s32.totalorder %s31, 3
      %p150 = por %p148, %p149
      %p151 = scmp.ne.s32.totalorder %s142, %s143
      %p152 = scmp.eq.s32.totalorder %s31, 0
      %p153 = por %p151, %p152
      %p154 = scmp.ne.s32.totalorder %s142, %s143
      %p155 = scmp.eq.s32.totalorder %s32, 3
      %p156 = por %p154, %p155
      %p158 = scmp.ne.s32.totalorder %s143, %s157
      %p159 = scmp.eq.s32.totalorder %s32, 0
      %p160 = por %p158, %p159
      %s161 = ssub.s32 %s34, %s41
      %p162 = scmp.eq.s32.totalorder %s161, 0
      %s164 = sadd.s32 %s163, 1
      %s165 = scalar_select %p162, %s163, %s164
      %p168 = pneg %p162
      %p169 = scmp.eq.s32.totalorder %s26, 3
      %p170 = por %p168, %p169
      %p171 = scmp.ne.s32.totalorder %s163, %s166
      %p172 = scmp.eq.s32.totalorder %s26, 0
      %p173 = por %p171, %p172
      %p174 = scmp.ne.s32.totalorder %s163, %s166
      %p175 = scmp.eq.s32.totalorder %s31, 3
      %p176 = por %p174, %p175
      %p177 = scmp.ne.s32.totalorder %s166, %s167
      %p178 = scmp.eq.s32.totalorder %s31, 0
      %p179 = por %p177, %p178
      %p180 = scmp.ne.s32.totalorder %s166, %s167
      %p181 = scmp.eq.s32.totalorder %s32, 3
      %p182 = por %p180, %p181
      %p184 = scmp.ne.s32.totalorder %s167, %s183
      %p185 = scmp.eq.s32.totalorder %s32, 0
      %p186 = por %p184, %p185
      %s187 = ssub.s32 %s34, %s41
      %p188 = scmp.eq.s32.totalorder %s187, 0
      %s190 = sadd.s32 %s189, 1
      %s191 = scalar_select %p188, %s189, %s190
      %p194 = pneg %p188
      %p195 = scmp.eq.s32.totalorder %s26, 3
      %p196 = por %p194, %p195
      %p197 = scmp.ne.s32.totalorder %s189, %s192
      %p198 = scmp.eq.s32.totalorder %s26, 0
      %p199 = por %p197, %p198
      %p200 = scmp.ne.s32.totalorder %s189, %s192
      %p201 = scmp.eq.s32.totalorder %s31, 3
      %p202 = por %p200, %p201
      %p203 = scmp.ne.s32.totalorder %s192, %s193
      %p204 = scmp.eq.s32.totalorder %s31, 0
      %p205 = por %p203, %p204
      %p206 = scmp.ne.s32.totalorder %s192, %s193
      %p207 = scmp.eq.s32.totalorder %s32, 3
      %p208 = por %p206, %p207
      %p210 = scmp.ne.s32.totalorder %s193, %s209
      %p211 = scmp.eq.s32.totalorder %s32, 0
      %p212 = por %p210, %p211
      %s213 = ssub.s32 %s34, %s41
      %p214 = scmp.eq.s32.totalorder %s213, 0
      %s216 = sadd.s32 %s215, 1
      %s217 = scalar_select %p214, %s215, %s216
      %p220 = pneg %p214
      %p221 = scmp.eq.s32.totalorder %s26, 3
      %p222 = por %p220, %p221
      %p223 = scmp.ne.s32.totalorder %s215, %s218
      %p224 = scmp.eq.s32.totalorder %s26, 0
      %p225 = por %p223, %p224
      %p226 = scmp.ne.s32.totalorder %s215, %s218
      %p227 = scmp.eq.s32.totalorder %s31, 3
      %p228 = por %p226, %p227
      %p229 = scmp.ne.s32.totalorder %s218, %s219
      %p230 = scmp.eq.s32.totalorder %s31, 0
      %p231 = por %p229, %p230
      %p232 = scmp.ne.s32.totalorder %s218, %s219
      %p233 = scmp.eq.s32.totalorder %s32, 3
      %p234 = por %p232, %p233
      %p236 = scmp.ne.s32.totalorder %s219, %s235
      %p237 = scmp.eq.s32.totalorder %s32, 0
      %p238 = por %p236, %p237
      %s239 = ssub.s32 %s34, %s41
      %p240 = scmp.eq.s32.totalorder %s239, 0
      %s242 = sadd.s32 %s241, 1
      %s243 = scalar_select %p240, %s241, %s242
      %p246 = pneg %p240
      %p247 = scmp.eq.s32.totalorder %s26, 3
      %p248 = por %p246, %p247
      %p249 = scmp.ne.s32.totalorder %s241, %s244
      %p250 = scmp.eq.s32.totalorder %s26, 0
      %p251 = por %p249, %p250
      %p252 = scmp.ne.s32.totalorder %s241, %s244
      %p253 = scmp.eq.s32.totalorder %s31, 3
      %p254 = por %p252, %p253
      %p255 = scmp.ne.s32.totalorder %s244, %s245
      %p256 = scmp.eq.s32.totalorder %s31, 0
      %p257 = por %p255, %p256
      %p258 = scmp.ne.s32.totalorder %s244, %s245
      %p259 = scmp.eq.s32.totalorder %s32, 3
      %p260 = por %p258, %p259
      %p262 = scmp.ne.s32.totalorder %s245, %s261
      %p263 = scmp.eq.s32.totalorder %s32, 0
      %p264 = por %p262, %p263
      %s265 = ssub.s32 %s34, %s41
      %p266 = scmp.eq.s32.totalorder %s265, 0
      %s268 = sadd.s32 %s267, 1
      %s269 = scalar_select %p266, %s267, %s268
      %p272 = pneg %p266
      %p273 = scmp.eq.s32.totalorder %s26, 3
      %p274 = por %p272, %p273
      %p275 = scmp.ne.s32.totalorder %s267, %s270
      %p276 = scmp.eq.s32.totalorder %s26, 0
      %p277 = por %p275, %p276
      %p278 = scmp.ne.s32.totalorder %s267, %s270
      %p279 = scmp.eq.s32.totalorder %s31, 3
      %p280 = por %p278, %p279
      %p281 = scmp.ne.s32.totalorder %s270, %s271
      %p282 = scmp.eq.s32.totalorder %s31, 0
      %p283 = por %p281, %p282
      %p284 = scmp.ne.s32.totalorder %s270, %s271
      %p285 = scmp.eq.s32.totalorder %s32, 3
      %p286 = por %p284, %p285
      %p288 = scmp.ne.s32.totalorder %s271, %s287
      %p289 = scmp.eq.s32.totalorder %s32, 0
      %p290 = por %p288, %p289
      %s291 = ssub.s32 %s34, %s41
      %p292 = scmp.eq.s32.totalorder %s291, 0
      %s294 = sadd.s32 %s293, 1
      %s295 = scalar_select %p292, %s293, %s294
      %p298 = pneg %p292
      %p299 = scmp.eq.s32.totalorder %s26, 3
      %p300 = por %p298, %p299
      %p301 = scmp.ne.s32.totalorder %s293, %s296
      %p302 = scmp.eq.s32.totalorder %s26, 0
      %p303 = por %p301, %p302
      %p304 = scmp.ne.s32.totalorder %s293, %s296
      %p305 = scmp.eq.s32.totalorder %s31, 3
      %p306 = por %p304, %p305
      %p307 = scmp.ne.s32.totalorder %s296, %s297
      %p308 = scmp.eq.s32.totalorder %s31, 0
      %p309 = por %p307, %p308
      %p310 = scmp.ne.s32.totalorder %s296, %s297
      %p311 = scmp.eq.s32.totalorder %s32, 3
      %p312 = por %p310, %p311
      %p314 = scmp.ne.s32.totalorder %s297, %s313
      %p315 = scmp.eq.s32.totalorder %s32, 0
      %p316 = por %p314, %p315
      %s317 = ssub.s32 %s34, %s41
      %p318 = scmp.eq.s32.totalorder %s317, 0
      %s320 = sadd.s32 %s319, 1
      %s321 = scalar_select %p318, %s319, %s320
      %p324 = pneg %p318
      %p325 = scmp.eq.s32.totalorder %s26, 3
      %p326 = por %p324, %p325
      %p327 = scmp.ne.s32.totalorder %s319, %s322
      %p328 = scmp.eq.s32.totalorder %s26, 0
      %p329 = por %p327, %p328
      %p330 = scmp.ne.s32.totalorder %s319, %s322
      %p331 = scmp.eq.s32.totalorder %s31, 3
      %p332 = por %p330, %p331
      %p333 = scmp.ne.s32.totalorder %s322, %s323
      %p334 = scmp.eq.s32.totalorder %s31, 0
      %p335 = por %p333, %p334
      %p336 = scmp.ne.s32.totalorder %s322, %s323
      %p337 = scmp.eq.s32.totalorder %s32, 3
      %p338 = por %p336, %p337
      %p340 = scmp.ne.s32.totalorder %s323, %s339
      %p341 = scmp.eq.s32.totalorder %s32, 0
      %p342 = por %p340, %p341
      %s343 = ssub.s32 %s34, %s41
      %p344 = scmp.eq.s32.totalorder %s343, 0
      %s346 = sadd.s32 %s345, 1
      %s347 = scalar_select %p344, %s345, %s346
      %p350 = pneg %p344
      %p351 = scmp.eq.s32.totalorder %s26, 3
      %p352 = por %p350, %p351
      %p353 = scmp.ne.s32.totalorder %s345, %s348
      %p354 = scmp.eq.s32.totalorder %s26, 0
      %p355 = por %p353, %p354
      %p356 = scmp.ne.s32.totalorder %s345, %s348
      %p357 = scmp.eq.s32.totalorder %s31, 3
      %p358 = por %p356, %p357
      %p359 = scmp.ne.s32.totalorder %s348, %s349
      %p360 = scmp.eq.s32.totalorder %s31, 0
      %p361 = por %p359, %p360
      %p362 = scmp.ne.s32.totalorder %s348, %s349
      %p363 = scmp.eq.s32.totalorder %s32, 3
      %p364 = por %p362, %p363
      %p366 = scmp.ne.s32.totalorder %s349, %s365
      %p367 = scmp.eq.s32.totalorder %s32, 0
      %p368 = por %p366, %p367
      %s369 = ssub.s32 %s34, %s41
      %p370 = scmp.eq.s32.totalorder %s369, 0
      %s372 = sadd.s32 %s371, 1
      %s373 = scalar_select %p370, %s371, %s372
      %p376 = pneg %p370
      %p377 = scmp.eq.s32.totalorder %s26, 3
      %p378 = por %p376, %p377
      %p379 = scmp.ne.s32.totalorder %s371, %s374
      %p380 = scmp.eq.s32.totalorder %s26, 0
      %p381 = por %p379, %p380
      %p382 = scmp.ne.s32.totalorder %s371, %s374
      %p383 = scmp.eq.s32.totalorder %s31, 3
      %p384 = por %p382, %p383
      %p385 = scmp.ne.s32.totalorder %s374, %s375
      %p386 = scmp.eq.s32.totalorder %s31, 0
      %p387 = por %p385, %p386
      %p388 = scmp.ne.s32.totalorder %s374, %s375
      %p389 = scmp.eq.s32.totalorder %s32, 3
      %p390 = por %p388, %p389
      %p392 = scmp.ne.s32.totalorder %s375, %s391
      %p393 = scmp.eq.s32.totalorder %s32, 0
      %p394 = por %p392, %p393
      %s395 = ssub.s32 %s34, %s41
      %p396 = scmp.eq.s32.totalorder %s395, 0
      %s398 = sadd.s32 %s397, 1
      %s399 = scalar_select %p396, %s397, %s398
      %p402 = pneg %p396
      %p403 = scmp.eq.s32.totalorder %s26, 3
      %p404 = por %p402, %p403
      %p405 = scmp.ne.s32.totalorder %s397, %s400
      %p406 = scmp.eq.s32.totalorder %s26, 0
      %p407 = por %p405, %p406
      %p408 = scmp.ne.s32.totalorder %s397, %s400
      %p409 = scmp.eq.s32.totalorder %s31, 3
      %p410 = por %p408, %p409
      %p411 = scmp.ne.s32.totalorder %s400, %s401
      %p412 = scmp.eq.s32.totalorder %s31, 0
      %p413 = por %p411, %p412
      %p414 = scmp.ne.s32.totalorder %s400, %s401
      %p415 = scmp.eq.s32.totalorder %s32, 3
      %p416 = por %p414, %p415
      %p418 = scmp.ne.s32.totalorder %s401, %s417
      %p419 = scmp.eq.s32.totalorder %s32, 0
      %p420 = por %p418, %p419
      %s421 = ssub.s32 %s34, %s41
      %p422 = scmp.eq.s32.totalorder %s421, 0
      %s424 = sadd.s32 %s423, 1
      %s425 = scalar_select %p422, %s423, %s424
      %p428 = pneg %p422
      %p429 = scmp.eq.s32.totalorder %s26, 3
      %p430 = por %p428, %p429
      %p431 = scmp.ne.s32.totalorder %s423, %s426
      %p432 = scmp.eq.s32.totalorder %s26, 0
      %p433 = por %p431, %p432
      %p434 = scmp.ne.s32.totalorder %s423, %s426
      %p435 = scmp.eq.s32.totalorder %s31, 3
      %p436 = por %p434, %p435
      %p437 = scmp.ne.s32.totalorder %s426, %s427
      %p438 = scmp.eq.s32.totalorder %s31, 0
      %p439 = por %p437, %p438
      %p440 = scmp.ne.s32.totalorder %s426, %s427
      %p441 = scmp.eq.s32.totalorder %s32, 3
      %p442 = por %p440, %p441
      %p444 = scmp.ne.s32.totalorder %s427, %s443
      %p445 = scmp.eq.s32.totalorder %s32, 0
      %p446 = por %p444, %p445
      %s447 = ssub.s32 %s34, %s41
      %p448 = scmp.eq.s32.totalorder %s447, 0
      %s450 = sadd.s32 %s449, 1
      %s451 = scalar_select %p448, %s449, %s450
      %p454 = pneg %p448
      %p455 = scmp.eq.s32.totalorder %s26, 3
      %p456 = por %p454, %p455
      %p457 = scmp.ne.s32.totalorder %s449, %s452
      %p458 = scmp.eq.s32.totalorder %s26, 0
      %p459 = por %p457, %p458
      %p460 = scmp.ne.s32.totalorder %s449, %s452
      %p461 = scmp.eq.s32.totalorder %s31, 3
      %p462 = por %p460, %p461
      %p463 = scmp.ne.s32.totalorder %s452, %s453
      %p464 = scmp.eq.s32.totalorder %s31, 0
      %p465 = por %p463, %p464
      %p466 = scmp.ne.s32.totalorder %s452, %s453
      %p467 = scmp.eq.s32.totalorder %s32, 3
      %p468 = por %p466, %p467
      %p470 = scmp.ne.s32.totalorder %s453, %s469
      %p471 = scmp.eq.s32.totalorder %s32, 0
      %p472 = por %p470, %p471
      %s473 = ssub.s32 %s33, %s45
      %p474 = scmp.eq.s32.totalorder %s473, 0
      %s476 = sadd.s32 %s475, 1
      %s477 = scalar_select %p474, %s475, %s476
      %p480 = pneg %p474
      %p481 = scmp.eq.s32.totalorder %s26, 3
      %p482 = por %p480, %p481
      %p483 = scmp.ne.s32.totalorder %s475, %s478
      %p484 = scmp.eq.s32.totalorder %s26, 0
      %p485 = por %p483, %p484
      %p486 = scmp.ne.s32.totalorder %s475, %s478
      %p487 = scmp.eq.s32.totalorder %s31, 3
      %p488 = por %p486, %p487
      %p489 = scmp.ne.s32.totalorder %s478, %s479
      %p490 = scmp.eq.s32.totalorder %s31, 0
      %p491 = por %p489, %p490
      %p492 = scmp.ne.s32.totalorder %s478, %s479
      %p493 = scmp.eq.s32.totalorder %s32, 3
      %p494 = por %p492, %p493
      %p496 = scmp.ne.s32.totalorder %s479, %s495
      %p497 = scmp.eq.s32.totalorder %s32, 0
      %p498 = por %p496, %p497
      %p499 = scmp.le.s32.totalorder 1, %s26
      %p500 = scmp.lt.s32.totalorder %s26, 5
      %p501 = pnand %p499, %p500
      %p502 = pneg %p501
      // Predicated region
      $region9: #{tpu_custom_call.1} parent=5 // pred_check
        _
      $region10: #{tpu_custom_call.1} parent=5 // pred_check_branch
        %504 = sbr.rel (%p501) target = $region12
      $region11: #{tpu_custom_call.1} parent=5 // pred_region
        %s505 = ssub.s32 %s26, 1
        // Predicated region
        $region13: #{tpu_custom_call.1} parent=11 // pred_check
          %p506 = pneg %p111
        $region14: #{tpu_custom_call.1} parent=11 // pred_check_branch
          %508 = sbr.rel (%p506) target = $region16
        $region15: #{tpu_custom_call.1} parent=11 // pred_region
          _
        $region16: #{tpu_custom_call.1} parent=11 // pred_fallthru
          _
        // Predicated region
        $region17: #{tpu_custom_call.1} parent=11 // pred_check
          %p509 = pneg %p132
        $region18: #{tpu_custom_call.1} parent=11 // pred_check_branch
          %511 = sbr.rel (%p509) target = $region20
        $region19: #{tpu_custom_call.1} parent=11 // pred_region
          _
        $region20: #{tpu_custom_call.1} parent=11 // pred_fallthru
          _
        // Predicated region
        $region21: #{tpu_custom_call.1} parent=11 // pred_check
          %p512 = pneg %p153
        $region22: #{tpu_custom_call.1} parent=11 // pred_check_branch
          %514 = sbr.rel (%p512) target = $region24
        $region23: #{tpu_custom_call.1} parent=11 // pred_region
          _
        $region24: #{tpu_custom_call.1} parent=11 // pred_fallthru
          _
      $region12: #{tpu_custom_call.1} parent=5 // pred_fallthru
        _
      %p515 = scmp.lt.s32.totalorder %s26, 4
      // Predicated region
      $region25: #{tpu_custom_call.1} parent=5 // pred_check
        %p516 = pneg %p515
      $region26: #{tpu_custom_call.1} parent=5 // pred_check_branch
        %518 = sbr.rel (%p516) target = $region28
      $region27: #{tpu_custom_call.1} parent=5 // pred_region
        // Predicated region
        $region29: #{tpu_custom_call.1} parent=27 // pred_check
          %p519 = pneg %p58
        $region30: #{tpu_custom_call.1} parent=27 // pred_check_branch
          %521 = sbr.rel (%p519) target = $region32
        $region31: #{tpu_custom_call.1} parent=27 // pred_region
          %p522 = scmp.lt.s32.totalorder %s33, 1
          %s523 = scalar_select %p522, %s33, 1
          %s524 = smul.addr %s523, 8
          %s525 = scalar_lea.vmem %s0, %s524
        $region32: #{tpu_custom_call.1} parent=27 // pred_fallthru
          _
        // Predicated region
        $region33: #{tpu_custom_call.1} parent=27 // pred_check
          %p526 = pneg %p84
        $region34: #{tpu_custom_call.1} parent=27 // pred_check_branch
          %528 = sbr.rel (%p526) target = $region36
        $region35: #{tpu_custom_call.1} parent=27 // pred_region
          %p529 = scmp.lt.s32.totalorder %s33, 1
          %s530 = scalar_select %p529, %s33, 1
          %s531 = scalar_lea.vmem %s1, %s530
        $region36: #{tpu_custom_call.1} parent=27 // pred_fallthru
          _
        // Predicated region
        $region37: #{tpu_custom_call.1} parent=27 // pred_check
          %p532 = pneg %p173
        $region38: #{tpu_custom_call.1} parent=27 // pred_check_branch
          %534 = sbr.rel (%p532) target = $region40
        $region39: #{tpu_custom_call.1} parent=27 // pred_region
          %p535 = scmp.lt.s32.totalorder %s34, 1
          %s536 = scalar_select %p535, %s34, 1
          %s537 = smul.addr %s536, 4
          %s538 = smul.addr %s537, 4
          %s539 = scalar_lea.vmem %s5, %s538
        $region40: #{tpu_custom_call.1} parent=27 // pred_fallthru
          _
        // Predicated region
        $region41: #{tpu_custom_call.1} parent=27 // pred_check
          %p540 = pneg %p199
        $region42: #{tpu_custom_call.1} parent=27 // pred_check_branch
          %542 = sbr.rel (%p540) target = $region44
        $region43: #{tpu_custom_call.1} parent=27 // pred_region
          %p543 = scmp.lt.s32.totalorder %s34, 1
          %s544 = scalar_select %p543, %s34, 1
          %s545 = scalar_lea.vmem %s6, %s544
        $region44: #{tpu_custom_call.1} parent=27 // pred_fallthru
          _
        // Predicated region
        $region45: #{tpu_custom_call.1} parent=27 // pred_check
          %p546 = pneg %p225
        $region46: #{tpu_custom_call.1} parent=27 // pred_check_branch
          %548 = sbr.rel (%p546) target = $region48
        $region47: #{tpu_custom_call.1} parent=27 // pred_region
          %p549 = scmp.lt.s32.totalorder %s34, 1
          %s550 = scalar_select %p549, %s34, 1
          %s551 = smul.addr %s550, 4
          %s552 = smul.addr %s551, 4
          %s553 = scalar_lea.vmem %s7, %s552
        $region48: #{tpu_custom_call.1} parent=27 // pred_fallthru
          _
        // Predicated region
        $region49: #{tpu_custom_call.1} parent=27 // pred_check
          %p554 = pneg %p251
        $region50: #{tpu_custom_call.1} parent=27 // pred_check_branch
          %556 = sbr.rel (%p554) target = $region52
        $region51: #{tpu_custom_call.1} parent=27 // pred_region
          %p557 = scmp.lt.s32.totalorder %s34, 1
          %s558 = scalar_select %p557, %s34, 1
          %s559 = scalar_lea.vmem %s8, %s558
        $region52: #{tpu_custom_call.1} parent=27 // pred_fallthru
          _
        // Predicated region
        $region53: #{tpu_custom_call.1} parent=27 // pred_check
          %p560 = pneg %p277
        $region54: #{tpu_custom_call.1} parent=27 // pred_check_branch
          %562 = sbr.rel (%p560) target = $region56
        $region55: #{tpu_custom_call.1} parent=27 // pred_region
          %p563 = scmp.lt.s32.totalorder %s34, 1
          %s564 = scalar_select %p563, %s34, 1
          %s565 = scalar_lea.vmem %s9, %s564
        $region56: #{tpu_custom_call.1} parent=27 // pred_fallthru
          _
        // Predicated region
        $region57: #{tpu_custom_call.1} parent=27 // pred_check
          %p566 = pneg %p303
        $region58: #{tpu_custom_call.1} parent=27 // pred_check_branch
          %568 = sbr.rel (%p566) target = $region60
        $region59: #{tpu_custom_call.1} parent=27 // pred_region
          %p569 = scmp.lt.s32.totalorder %s34, 1
          %s570 = scalar_select %p569, %s34, 1
          %s571 = scalar_lea.vmem %s10, %s570
        $region60: #{tpu_custom_call.1} parent=27 // pred_fallthru
          _
        // Predicated region
        $region61: #{tpu_custom_call.1} parent=27 // pred_check
          %p572 = pneg %p329
        $region62: #{tpu_custom_call.1} parent=27 // pred_check_branch
          %574 = sbr.rel (%p572) target = $region64
        $region63: #{tpu_custom_call.1} parent=27 // pred_region
          %p575 = scmp.lt.s32.totalorder %s34, 1
          %s576 = scalar_select %p575, %s34, 1
          %s577 = smul.addr %s576, 4
          %s578 = smul.addr %s577, 4
          %s579 = scalar_lea.vmem %s11, %s578
        $region64: #{tpu_custom_call.1} parent=27 // pred_fallthru
          _
        // Predicated region
        $region65: #{tpu_custom_call.1} parent=27 // pred_check
          %p580 = pneg %p355
        $region66: #{tpu_custom_call.1} parent=27 // pred_check_branch
          %582 = sbr.rel (%p580) target = $region68
        $region67: #{tpu_custom_call.1} parent=27 // pred_region
          %p583 = scmp.lt.s32.totalorder %s34, 1
          %s584 = scalar_select %p583, %s34, 1
          %s585 = scalar_lea.vmem %s12, %s584
        $region68: #{tpu_custom_call.1} parent=27 // pred_fallthru
          _
        // Predicated region
        $region69: #{tpu_custom_call.1} parent=27 // pred_check
          %p586 = pneg %p381
        $region70: #{tpu_custom_call.1} parent=27 // pred_check_branch
          %588 = sbr.rel (%p586) target = $region72
        $region71: #{tpu_custom_call.1} parent=27 // pred_region
          %p589 = scmp.lt.s32.totalorder %s34, 1
          %s590 = scalar_select %p589, %s34, 1
          %s591 = smul.addr %s590, 8
          %s592 = smul.addr %s591, 4
          %s593 = scalar_lea.vmem %s13, %s592
        $region72: #{tpu_custom_call.1} parent=27 // pred_fallthru
          _
        // Predicated region
        $region73: #{tpu_custom_call.1} parent=27 // pred_check
          %p594 = pneg %p407
        $region74: #{tpu_custom_call.1} parent=27 // pred_check_branch
          %596 = sbr.rel (%p594) target = $region76
        $region75: #{tpu_custom_call.1} parent=27 // pred_region
          %p597 = scmp.lt.s32.totalorder %s34, 1
          %s598 = scalar_select %p597, %s34, 1
          %s599 = scalar_lea.vmem %s14, %s598
        $region76: #{tpu_custom_call.1} parent=27 // pred_fallthru
          _
        // Predicated region
        $region77: #{tpu_custom_call.1} parent=27 // pred_check
          %p600 = pneg %p433
        $region78: #{tpu_custom_call.1} parent=27 // pred_check_branch
          %602 = sbr.rel (%p600) target = $region80
        $region79: #{tpu_custom_call.1} parent=27 // pred_region
          %p603 = scmp.lt.s32.totalorder %s34, 1
          %s604 = scalar_select %p603, %s34, 1
          %s605 = scalar_lea.vmem %s15, %s604
        $region80: #{tpu_custom_call.1} parent=27 // pred_fallthru
          _
        // Predicated region
        $region81: #{tpu_custom_call.1} parent=27 // pred_check
          %p606 = pneg %p459
        $region82: #{tpu_custom_call.1} parent=27 // pred_check_branch
          %608 = sbr.rel (%p606) target = $region84
        $region83: #{tpu_custom_call.1} parent=27 // pred_region
          %p609 = scmp.lt.s32.totalorder %s34, 1
          %s610 = scalar_select %p609, %s34, 1
          %s611 = scalar_lea.vmem %s16, %s610
        $region84: #{tpu_custom_call.1} parent=27 // pred_fallthru
          _
      $region28: #{tpu_custom_call.1} parent=5 // pred_fallthru
        _
      %p612 = scmp.le.s32.totalorder 1, %s26
      %p613 = scmp.lt.s32.totalorder %s26, 5
      %p614 = pnand %p612, %p613
      %p615 = pneg %p614
      // Predicated region
      $region85: #{tpu_custom_call.1} parent=5 // pred_check
        _
      $region86: #{tpu_custom_call.1} parent=5 // pred_check_branch
        %617 = sbr.rel (%p614) target = $region88
      $region87: #{tpu_custom_call.1} parent=5 // pred_region
        %s618 = ssub.s32 %s26, 1
        %p619 = scmp.lt.s32.totalorder %s35, 1
        %s620 = scalar_select %p619, %s35, 1
        %s621 = smul.addr %s620, 8
        %s622 = scalar_lea.vmem %s0, %s621
        %p623 = pneg %p64
        %p624 = pneg %p61
        %p625 = scmp.lt.s32.totalorder %s35, 1
        %s626 = scalar_select %p625, %s35, 1
        %s627 = scalar_lea.vmem %s1, %s626
        %p628 = pneg %p90
        %p629 = pneg %p87
        %p630 = pneg %p111
        %p631 = pneg %p108
        %p632 = pneg %p132
        %p633 = pneg %p129
        %p634 = pneg %p153
        %p635 = pneg %p150
        %p636 = scmp.lt.s32.totalorder %s36, 1
        %s637 = scalar_select %p636, %s36, 1
        %s638 = smul.addr %s637, 4
        %s639 = smul.addr %s638, 4
        %s640 = scalar_lea.vmem %s5, %s639
        %p641 = pneg %p179
        %p642 = pneg %p176
        %p643 = scmp.lt.s32.totalorder %s36, 1
        %s644 = scalar_select %p643, %s36, 1
        %s645 = scalar_lea.vmem %s6, %s644
        %p646 = pneg %p205
        %p647 = pneg %p202
        %p648 = scmp.lt.s32.totalorder %s36, 1
        %s649 = scalar_select %p648, %s36, 1
        %s650 = smul.addr %s649, 4
        %s651 = smul.addr %s650, 4
        %s652 = scalar_lea.vmem %s7, %s651
        %p653 = pneg %p231
        %p654 = pneg %p228
        %p655 = scmp.lt.s32.totalorder %s36, 1
        %s656 = scalar_select %p655, %s36, 1
        %s657 = scalar_lea.vmem %s8, %s656
        %p658 = pneg %p257
        %p659 = pneg %p254
        %p660 = scmp.lt.s32.totalorder %s36, 1
        %s661 = scalar_select %p660, %s36, 1
        %s662 = scalar_lea.vmem %s9, %s661
        %p663 = pneg %p283
        %p664 = pneg %p280
        %p665 = scmp.lt.s32.totalorder %s36, 1
        %s666 = scalar_select %p665, %s36, 1
        %s667 = scalar_lea.vmem %s10, %s666
        %p668 = pneg %p309
        %p669 = pneg %p306
        %p670 = scmp.lt.s32.totalorder %s36, 1
        %s671 = scalar_select %p670, %s36, 1
        %s672 = smul.addr %s671, 4
        %s673 = smul.addr %s672, 4
        %s674 = scalar_lea.vmem %s11, %s673
        %p675 = pneg %p335
        %p676 = pneg %p332
        %p677 = scmp.lt.s32.totalorder %s36, 1
        %s678 = scalar_select %p677, %s36, 1
        %s679 = scalar_lea.vmem %s12, %s678
        %p680 = pneg %p361
        %p681 = pneg %p358
        %p682 = scmp.lt.s32.totalorder %s36, 1
        %s683 = scalar_select %p682, %s36, 1
        %s684 = smul.addr %s683, 8
        %s685 = smul.addr %s684, 4
        %s686 = scalar_lea.vmem %s13, %s685
        %p687 = pneg %p387
        %p688 = pneg %p384
        %p689 = scmp.lt.s32.totalorder %s36, 1
        %s690 = scalar_select %p689, %s36, 1
        %s691 = scalar_lea.vmem %s14, %s690
        %p692 = pneg %p413
        %p693 = pneg %p410
        %p694 = scmp.lt.s32.totalorder %s36, 1
        %s695 = scalar_select %p694, %s36, 1
        %s696 = scalar_lea.vmem %s15, %s695
        %p697 = pneg %p439
        %p698 = pneg %p436
        %p699 = scmp.lt.s32.totalorder %s36, 1
        %s700 = scalar_select %p699, %s36, 1
        %s701 = scalar_lea.vmem %s16, %s700
        %p702 = pneg %p465
        %p703 = pneg %p462
        %p704 = pneg %p491
        %p705 = pneg %p488
        %s706 = sand.u32 %s478, 1
        %s707 = scalar_lea.sflag [#allocation4], %s706
        %s708 = sand.u32 %s478, 1
        %s709 = smul.addr %s708, 8
        %s710 = scalar_lea.vmem [#allocation3], %s709
        %p711 = scmp.lt.s32.totalorder %s35, 1
        %s712 = scalar_select %p711, %s35, 1
        %s713 = smul.addr %s712, 8
        %s714 = scalar_lea.vmem %s0, %s713
        %p715 = scmp.lt.s32.totalorder %s35, 1
        %s716 = scalar_select %p715, %s35, 1
        %s717 = scalar_lea.vmem %s1, %s716
        %p718 = scmp.lt.s32.totalorder %s36, 1
        %s719 = scalar_select %p718, %s36, 1
        %s720 = smul.addr %s719, 4
        %s721 = smul.addr %s720, 4
        %s722 = scalar_lea.vmem %s5, %s721
        %p723 = scmp.lt.s32.totalorder %s36, 1
        %s724 = scalar_select %p723, %s36, 1
        %s725 = scalar_lea.vmem %s6, %s724
        %p726 = scmp.lt.s32.totalorder %s36, 1
        %s727 = scalar_select %p726, %s36, 1
        %s728 = smul.addr %s727, 4
        %s729 = smul.addr %s728, 4
        %s730 = scalar_lea.vmem %s7, %s729
        %p731 = scmp.lt.s32.totalorder %s36, 1
        %s732 = scalar_select %p731, %s36, 1
        %s733 = scalar_lea.vmem %s8, %s732
        %p734 = scmp.lt.s32.totalorder %s36, 1
        %s735 = scalar_select %p734, %s36, 1
        %s736 = scalar_lea.vmem %s9, %s735
        %p737 = scmp.lt.s32.totalorder %s36, 1
        %s738 = scalar_select %p737, %s36, 1
        %s739 = scalar_lea.vmem %s10, %s738
        %p740 = scmp.lt.s32.totalorder %s36, 1
        %s741 = scalar_select %p740, %s36, 1
        %s742 = smul.addr %s741, 4
        %s743 = smul.addr %s742, 4
        %s744 = scalar_lea.vmem %s11, %s743
        %p745 = scmp.lt.s32.totalorder %s36, 1
        %s746 = scalar_select %p745, %s36, 1
        %s747 = scalar_lea.vmem %s12, %s746
        %p748 = scmp.lt.s32.totalorder %s36, 1
        %s749 = scalar_select %p748, %s36, 1
        %s750 = smul.addr %s749, 8
        %s751 = smul.addr %s750, 4
        %s752 = scalar_lea.vmem %s13, %s751
        %p753 = scmp.lt.s32.totalorder %s36, 1
        %s754 = scalar_select %p753, %s36, 1
        %s755 = scalar_lea.vmem %s14, %s754
        %p756 = scmp.lt.s32.totalorder %s36, 1
        %s757 = scalar_select %p756, %s36, 1
        %s758 = scalar_lea.vmem %s15, %s757
        %p759 = scmp.lt.s32.totalorder %s36, 1
        %s760 = scalar_select %p759, %s36, 1
        %s761 = scalar_lea.vmem %s16, %s760
        %p763 = scmp.eq.s32.totalorder %s36, 0
        // Predicated region
        $region89: #{tpu_custom_call.1} parent=87 // pred_check
          %p764 = pneg %p763
        $region90: #{tpu_custom_call.1} parent=87 // pred_check_branch
          %766 = sbr.rel (%p764) target = $region92
        $region91: #{tpu_custom_call.1} parent=87 // pred_region
          %v767 = vld [vmem:[%s714] sm:$0xff]
          %v768 = vpack.c.bf16 %v767, %v767
          %v769 = vld [vmem:[%s3] sm:$0x3]
          %v770 = vld [vmem:[%s4] sm:$0x1]
          %v772 = vlaneseq
          %v773 = vshrl.u32 %v772, 7
          %v774 = vsub.s32 0, %v773
          %v775 = vrot.slane %v770, %v774
          %vm777 = vcmask 31744
          %v779 = vsel %vm777, %v768, 0
          %vm781 = vcmask 1041408
          %v783 = vsel %vm781, %v769, 0
          %785 = vmatprep.subr.bf16.mxu0 0
          %786 = vmatpush1.bf16.msra.mxu0 %v783
          %787 = vmatprep.subr.bf16.mxu0 0
          %788 = vmatpush1.bf16.msra.mxu0 0
          %789 = vmatprep.subr.bf16.mxu0 0
          %790 = vmatpush1.bf16.msra.mxu0 0
          %791 = vmatprep.subr.bf16.mxu0 0
          %792 = vmatpush1.bf16.msra.mxu0 0
          %793 = vmatprep.subr.bf16.mxu0 0
          %794 = vmatpush1.bf16.msra.mxu0 0
          %795 = vmatprep.subr.bf16.mxu0 0
          %796 = vmatpush1.bf16.msra.mxu0 0
          %797 = vmatprep.subr.bf16.mxu0 0
          %798 = vmatpush1.bf16.msra.mxu0 0
          %799 = vmatprep.subr.bf16.mxu0 0
          %800 = vmatpush1.bf16.msra.mxu0 0
          %801 = vmatprep.subr.bf16.mxu0 0
          %802 = vmatpush1.bf16.msra.mxu0 0
          %803 = vmatprep.subr.bf16.mxu0 0
          %804 = vmatpush1.bf16.msra.mxu0 0
          %805 = vmatprep.subr.bf16.mxu0 0
          %806 = vmatpush1.bf16.msra.mxu0 0
          %807 = vmatprep.subr.bf16.mxu0 0
          %808 = vmatpush1.bf16.msra.mxu0 0
          %809 = vmatprep.subr.bf16.mxu0 0
          %810 = vmatpush1.bf16.msra.mxu0 0
          %811 = vmatprep.subr.bf16.mxu0 0
          %812 = vmatpush1.bf16.msra.mxu0 0
          %813 = vmatprep.subr.bf16.mxu0 0
          %814 = vmatpush1.bf16.msra.mxu0 0
          %815 = vmatprep.subr.bf16.mxu0 0
          %816 = vmatpush1.bf16.msra.mxu0 0
          %817 = vmatprep.mubr.bf16.mxu0 0
          %818 = vmatmul.mubr.bf16.gmra.mrb[0].mxu0 %v779
          %v819 = vpop.f32.mrb[0].mxu0
          %v820 = vadd.f32 %v775, %v819
          %v821 = vpop.f32.mrb[0].mxu0
          %v822 = vpop.f32.mrb[0].mxu0
          %v823 = vpop.f32.mrb[0].mxu0
          %824 = vdwg.mxu0
          %v825 = vmul.f32 %v820, 5.656854
          %v826 = vld [vmem:[%s2] sm:$0xff]
          %v827 = vadd.f32 %v825, %v826
          %vm828 = vcmask 261120
          %829 = vst.msk [vmem:[#allocation2] sm:$0xff] %vm828, %v827
        $region92: #{tpu_custom_call.1} parent=87 // pred_fallthru
          _
        %v830 = vld [vmem:[#allocation2] sm:$0xff]
        %v831 = vpack.c.bf16 %v830, %v830
        %v832 = vld [vmem:[%s722] sm:$0xf]
        %v833 = vld [vmem:[%s722 + $0x4] sm:$0xf]
        %v834 = vld [vmem:[%s722 + $0x8] sm:$0xf]
        %v835 = vld [vmem:[%s722 + $0xc] sm:$0xf]
        %v836 = vld [vmem:[%s725] sm:$0x1]
        %v838 = vlaneseq
        %v839 = vshrl.u32 %v838, 7
        %v840 = vsub.s32 0, %v839
        %v841 = vrot.slane %v836, %v840
        %v847 = vunpack.c.l.b16 %v832
        %v848 = vunpack.c.l.b16 %v833
        %v849 = vunpack.c.l.b16 %v834
        %v850 = vunpack.c.l.b16 %v835
        %v851 = vpack.c.b16 %v848, %v847
        %v852 = vpack.c.b16 %v850, %v849
        %vm855 = vcmask 261120
        %v857 = vsel %vm855, %v831, 0
        %859 = vmatprep.subr.bf16.mxu0 0
        %860 = vmatpush1.bf16.msra.mxu0 %v851
        %861 = vmatprep.subr.bf16.mxu0 0
        %862 = vmatpush1.bf16.msra.mxu0 %v852
        %863 = vmatprep.subr.bf16.mxu0 0
        %864 = vmatpush1.bf16.msra.mxu0 0
        %865 = vmatprep.subr.bf16.mxu0 0
        %866 = vmatpush1.bf16.msra.mxu0 0
        %867 = vmatprep.subr.bf16.mxu0 0
        %868 = vmatpush1.bf16.msra.mxu0 0
        %869 = vmatprep.subr.bf16.mxu0 0
        %870 = vmatpush1.bf16.msra.mxu0 0
        %871 = vmatprep.subr.bf16.mxu0 0
        %872 = vmatpush1.bf16.msra.mxu0 0
        %873 = vmatprep.subr.bf16.mxu0 0
        %874 = vmatpush1.bf16.msra.mxu0 0
        %875 = vmatprep.subr.bf16.mxu0 0
        %876 = vmatpush1.bf16.msra.mxu0 0
        %877 = vmatprep.subr.bf16.mxu0 0
        %878 = vmatpush1.bf16.msra.mxu0 0
        %879 = vmatprep.subr.bf16.mxu0 0
        %880 = vmatpush1.bf16.msra.mxu0 0
        %881 = vmatprep.subr.bf16.mxu0 0
        %882 = vmatpush1.bf16.msra.mxu0 0
        %883 = vmatprep.subr.bf16.mxu0 0
        %884 = vmatpush1.bf16.msra.mxu0 0
        %885 = vmatprep.subr.bf16.mxu0 0
        %886 = vmatpush1.bf16.msra.mxu0 0
        %887 = vmatprep.subr.bf16.mxu0 0
        %888 = vmatpush1.bf16.msra.mxu0 0
        %889 = vmatprep.subr.bf16.mxu0 0
        %890 = vmatpush1.bf16.msra.mxu0 0
        %891 = vmatprep.mubr.bf16.mxu0 0
        %892 = vmatmul.mubr.bf16.gmra.mrb[0].mxu0 %v857
        %v893 = vpop.f32.mrb[0].mxu0
        %v894 = vadd.f32 %v841, %v893
        %v895 = vpop.f32.mrb[0].mxu0
        %v896 = vpop.f32.mrb[0].mxu0
        %v897 = vpop.f32.mrb[0].mxu0
        %898 = vdwg.mxu0
        %v899 = vpack.c.bf16 %v894, %v894
        %v900 = vld [vmem:[%s717] sm:$0x1]
        %902 = vrot.lane.b32.xlu0 %v899, 96
        %v903 = vpop.permute.xlu0 %902
        %vm904 = vcmask 64512
        %v906 = vsel %vm904, %v899, 0
        %v909 = vsel %vm904, %v903, 0
        %911 = vmatprep.subr.bf16.mxu0 0
        %912 = vmatpush1.bf16.xpose.msra.mxu0 %v909
        %913 = vmatprep.subr.bf16.mxu0 0
        %914 = vmatpush1.bf16.xpose.msra.mxu0 0
        %915 = vmatprep.subr.bf16.mxu0 0
        %916 = vmatpush1.bf16.xpose.msra.mxu0 0
        %917 = vmatprep.subr.bf16.mxu0 0
        %918 = vmatpush1.bf16.xpose.msra.mxu0 0
        %919 = vmatprep.subr.bf16.mxu0 0
        %920 = vmatpush1.bf16.xpose.msra.mxu0 0
        %921 = vmatprep.subr.bf16.mxu0 0
        %922 = vmatpush1.bf16.xpose.msra.mxu0 0
        %923 = vmatprep.subr.bf16.mxu0 0
        %924 = vmatpush1.bf16.xpose.msra.mxu0 0
        %925 = vmatprep.subr.bf16.mxu0 0
        %926 = vmatpush1.bf16.xpose.msra.mxu0 0
        %927 = vmatprep.subr.bf16.mxu0 0
        %928 = vmatpush1.bf16.xpose.msra.mxu0 0
        %929 = vmatprep.subr.bf16.mxu0 0
        %930 = vmatpush1.bf16.xpose.msra.mxu0 0
        %931 = vmatprep.subr.bf16.mxu0 0
        %932 = vmatpush1.bf16.xpose.msra.mxu0 0
        %933 = vmatprep.subr.bf16.mxu0 0
        %934 = vmatpush1.bf16.xpose.msra.mxu0 0
        %935 = vmatprep.subr.bf16.mxu0 0
        %936 = vmatpush1.bf16.xpose.msra.mxu0 0
        %937 = vmatprep.subr.bf16.mxu0 0
        %938 = vmatpush1.bf16.xpose.msra.mxu0 0
        %939 = vmatprep.subr.bf16.mxu0 0
        %940 = vmatpush1.bf16.xpose.msra.mxu0 0
        %941 = vmatprep.subr.bf16.mxu0 0
        %942 = vmatpush1.bf16.xpose.msra.mxu0 0
        %943 = vmatprep.mubr.bf16.mxu0 0
        %944 = vmatmul.mubr.bf16.gmra.mrb[0].mxu0 %v906
        %v945 = vpop.f32.mrb[0].mxu0
        %v946 = vadd.f32 0.0, %v945
        %v947 = vpop.f32.mrb[0].mxu0
        %v948 = vpop.f32.mrb[0].mxu0
        %v949 = vpop.f32.mrb[0].mxu0
        %950 = vdwg.mxu0
        %v951 = vmul.f32 %v946, 0.35355338
        %v953 = vlaneseq
        %v954 = vshrl.u32 %v953, 7
        %v955 = vsub.s32 0, %v954
        %v956 = vrot.slane %v900, %v955
        %v958 = vadd.f32 %v951, %v956
        %v959 = vsel %vm904, %v958, -inf
        %960 = vmax.xlane.f32.xlu0 %v959
        %v961 = vpop.xlane.xlu0 %960
        %v962 = vsub.f32 %v958, %v961
        %v963 = vmul.f32 %v962, 1.442695
        %v964 = vpow.pop %v963
        %v965 = vsel %vm904, %v964, 0.0
        %966 = vadd.xlane.f32.xlu0 %v965
        %v967 = vpop.xlane.xlu0 %966
        %v968 = vrcp.pop %v967
        %v969 = vmul.f32 %v964, %v968
        %v970 = vpack.c.bf16 %v969, %v969
        %971 = vrot.lane.b32.xlu0 %v899, 64
        %v972 = vpop.permute.xlu0 %971
        %v974 = vsel %vm904, %v970, 0
        %vm976 = vcmask 1043456
        %v978 = vsel %vm976, %v972, 0
        %980 = vmatprep.subr.bf16.mxu0 0
        %981 = vmatpush1.bf16.msra.mxu0 %v978
        %982 = vmatprep.subr.bf16.mxu0 0
        %983 = vmatpush1.bf16.msra.mxu0 0
        %984 = vmatprep.subr.bf16.mxu0 0
        %985 = vmatpush1.bf16.msra.mxu0 0
        %986 = vmatprep.subr.bf16.mxu0 0
        %987 = vmatpush1.bf16.msra.mxu0 0
        %988 = vmatprep.subr.bf16.mxu0 0
        %989 = vmatpush1.bf16.msra.mxu0 0
        %990 = vmatprep.subr.bf16.mxu0 0
        %991 = vmatpush1.bf16.msra.mxu0 0
        %992 = vmatprep.subr.bf16.mxu0 0
        %993 = vmatpush1.bf16.msra.mxu0 0
        %994 = vmatprep.subr.bf16.mxu0 0
        %995 = vmatpush1.bf16.msra.mxu0 0
        %996 = vmatprep.subr.bf16.mxu0 0
        %997 = vmatpush1.bf16.msra.mxu0 0
        %998 = vmatprep.subr.bf16.mxu0 0
        %999 = vmatpush1.bf16.msra.mxu0 0
        %1000 = vmatprep.subr.bf16.mxu0 0
        %1001 = vmatpush1.bf16.msra.mxu0 0
        %1002 = vmatprep.subr.bf16.mxu0 0
        %1003 = vmatpush1.bf16.msra.mxu0 0
        %1004 = vmatprep.subr.bf16.mxu0 0
        %1005 = vmatpush1.bf16.msra.mxu0 0
        %1006 = vmatprep.subr.bf16.mxu0 0
        %1007 = vmatpush1.bf16.msra.mxu0 0
        %1008 = vmatprep.subr.bf16.mxu0 0
        %1009 = vmatpush1.bf16.msra.mxu0 0
        %1010 = vmatprep.subr.bf16.mxu0 0
        %1011 = vmatpush1.bf16.msra.mxu0 0
        %1012 = vmatprep.mubr.bf16.mxu0 0
        %1013 = vmatmul.mubr.bf16.gmra.mrb[0].mxu0 %v974
        %v1014 = vpop.f32.mrb[0].mxu0
        %v1015 = vadd.f32 0.0, %v1014
        %v1016 = vpop.f32.mrb[0].mxu0
        %v1017 = vpop.f32.mrb[0].mxu0
        %v1018 = vpop.f32.mrb[0].mxu0
        %1019 = vdwg.mxu0
        %v1020 = vpack.c.bf16 %v1015, %v1015
        %1021 = vrot.lane.b32.xlu0 %v899, 120
        %v1022 = vpop.permute.xlu0 %1021
        %1023 = vrot.lane.b32.xlu0 %v899, 88
        %v1024 = vpop.permute.xlu0 %1023
        %v1026 = vsel %vm904, %v1022, 0
        %v1029 = vsel %vm904, %v1024, 0
        %1031 = vmatprep.subr.bf16.mxu0 0
        %1032 = vmatpush1.bf16.xpose.msra.mxu0 %v1029
        %1033 = vmatprep.subr.bf16.mxu0 0
        %1034 = vmatpush1.bf16.xpose.msra.mxu0 0
        %1035 = vmatprep.subr.bf16.mxu0 0
        %1036 = vmatpush1.bf16.xpose.msra.mxu0 0
        %1037 = vmatprep.subr.bf16.mxu0 0
        %1038 = vmatpush1.bf16.xpose.msra.mxu0 0
        %1039 = vmatprep.subr.bf16.mxu0 0
        %1040 = vmatpush1.bf16.xpose.msra.mxu0 0
        %1041 = vmatprep.subr.bf16.mxu0 0
        %1042 = vmatpush1.bf16.xpose.msra.mxu0 0
        %1043 = vmatprep.subr.bf16.mxu0 0
        %1044 = vmatpush1.bf16.xpose.msra.mxu0 0
        %1045 = vmatprep.subr.bf16.mxu0 0
        %1046 = vmatpush1.bf16.xpose.msra.mxu0 0
        %1047 = vmatprep.subr.bf16.mxu0 0
        %1048 = vmatpush1.bf16.xpose.msra.mxu0 0
        %1049 = vmatprep.subr.bf16.mxu0 0
        %1050 = vmatpush1.bf16.xpose.msra.mxu0 0
        %1051 = vmatprep.subr.bf16.mxu0 0
        %1052 = vmatpush1.bf16.xpose.msra.mxu0 0
        %1053 = vmatprep.subr.bf16.mxu0 0
        %1054 = vmatpush1.bf16.xpose.msra.mxu0 0
        %1055 = vmatprep.subr.bf16.mxu0 0
        %1056 = vmatpush1.bf16.xpose.msra.mxu0 0
        %1057 = vmatprep.subr.bf16.mxu0 0
        %1058 = vmatpush1.bf16.xpose.msra.mxu0 0
        %1059 = vmatprep.subr.bf16.mxu0 0
        %1060 = vmatpush1.bf16.xpose.msra.mxu0 0
        %1061 = vmatprep.subr.bf16.mxu0 0
        %1062 = vmatpush1.bf16.xpose.msra.mxu0 0
        %1063 = vmatprep.mubr.bf16.mxu0 0
        %1064 = vmatmul.mubr.bf16.gmra.mrb[0].mxu0 %v1026
        %v1065 = vpop.f32.mrb[0].mxu0
        %v1066 = vadd.f32 0.0, %v1065
        %v1067 = vpop.f32.mrb[0].mxu0
        %v1068 = vpop.f32.mrb[0].mxu0
        %v1069 = vpop.f32.mrb[0].mxu0
        %1070 = vdwg.mxu0
        %v1071 = vmul.f32 %v1066, 0.35355338
        %v1072 = vadd.f32 %v1071, %v956
        %v1073 = vsel %vm904, %v1072, -inf
        %1074 = vmax.xlane.f32.xlu0 %v1073
        %v1075 = vpop.xlane.xlu0 %1074
        %v1076 = vsub.f32 %v1072, %v1075
        %v1077 = vmul.f32 %v1076, 1.442695
        %v1078 = vpow.pop %v1077
        %v1079 = vsel %vm904, %v1078, 0.0
        %1080 = vadd.xlane.f32.xlu0 %v1079
        %v1081 = vpop.xlane.xlu0 %1080
        %v1082 = vrcp.pop %v1081
        %v1083 = vmul.f32 %v1078, %v1082
        %v1084 = vpack.c.bf16 %v1083, %v1083
        %1085 = vrot.lane.b32.xlu0 %v899, 56
        %v1086 = vpop.permute.xlu0 %1085
        %v1088 = vsel %vm904, %v1084, 0
        %v1091 = vsel %vm976, %v1086, 0
        %1093 = vmatprep.subr.bf16.mxu0 0
        %1094 = vmatpush1.bf16.msra.mxu0 %v1091
        %1095 = vmatprep.subr.bf16.mxu0 0
        %1096 = vmatpush1.bf16.msra.mxu0 0
        %1097 = vmatprep.subr.bf16.mxu0 0
        %1098 = vmatpush1.bf16.msra.mxu0 0
        %1099 = vmatprep.subr.bf16.mxu0 0
        %1100 = vmatpush1.bf16.msra.mxu0 0
        %1101 = vmatprep.subr.bf16.mxu0 0
        %1102 = vmatpush1.bf16.msra.mxu0 0
        %1103 = vmatprep.subr.bf16.mxu0 0
        %1104 = vmatpush1.bf16.msra.mxu0 0
        %1105 = vmatprep.subr.bf16.mxu0 0
        %1106 = vmatpush1.bf16.msra.mxu0 0
        %1107 = vmatprep.subr.bf16.mxu0 0
        %1108 = vmatpush1.bf16.msra.mxu0 0
        %1109 = vmatprep.subr.bf16.mxu0 0
        %1110 = vmatpush1.bf16.msra.mxu0 0
        %1111 = vmatprep.subr.bf16.mxu0 0
        %1112 = vmatpush1.bf16.msra.mxu0 0
        %1113 = vmatprep.subr.bf16.mxu0 0
        %1114 = vmatpush1.bf16.msra.mxu0 0
        %1115 = vmatprep.subr.bf16.mxu0 0
        %1116 = vmatpush1.bf16.msra.mxu0 0
        %1117 = vmatprep.subr.bf16.mxu0 0
        %1118 = vmatpush1.bf16.msra.mxu0 0
        %1119 = vmatprep.subr.bf16.mxu0 0
        %1120 = vmatpush1.bf16.msra.mxu0 0
        %1121 = vmatprep.subr.bf16.mxu0 0
        %1122 = vmatpush1.bf16.msra.mxu0 0
        %1123 = vmatprep.subr.bf16.mxu0 0
        %1124 = vmatpush1.bf16.msra.mxu0 0
        %1125 = vmatprep.mubr.bf16.mxu0 0
        %1126 = vmatmul.mubr.bf16.gmra.mrb[0].mxu0 %v1088
        %v1127 = vpop.f32.mrb[0].mxu0
        %v1128 = vadd.f32 0.0, %v1127
        %v1129 = vpop.f32.mrb[0].mxu0
        %v1130 = vpop.f32.mrb[0].mxu0
        %v1131 = vpop.f32.mrb[0].mxu0
        %1132 = vdwg.mxu0
        %v1133 = vpack.c.bf16 %v1128, %v1128
        %1134 = vrot.lane.b32.xlu0 %v899, 112
        %v1135 = vpop.permute.xlu0 %1134
        %1136 = vrot.lane.b32.xlu0 %v899, 80
        %v1137 = vpop.permute.xlu0 %1136
        %v1139 = vsel %vm904, %v1135, 0
        %v1142 = vsel %vm904, %v1137, 0
        %1144 = vmatprep.subr.bf16.mxu0 0
        %1145 = vmatpush1.bf16.xpose.msra.mxu0 %v1142
        %1146 = vmatprep.subr.bf16.mxu0 0
        %1147 = vmatpush1.bf16.xpose.msra.mxu0 0
        %1148 = vmatprep.subr.bf16.mxu0 0
        %1149 = vmatpush1.bf16.xpose.msra.mxu0 0
        %1150 = vmatprep.subr.bf16.mxu0 0
        %1151 = vmatpush1.bf16.xpose.msra.mxu0 0
        %1152 = vmatprep.subr.bf16.mxu0 0
        %1153 = vmatpush1.bf16.xpose.msra.mxu0 0
        %1154 = vmatprep.subr.bf16.mxu0 0
        %1155 = vmatpush1.bf16.xpose.msra.mxu0 0
        %1156 = vmatprep.subr.bf16.mxu0 0
        %1157 = vmatpush1.bf16.xpose.msra.mxu0 0
        %1158 = vmatprep.subr.bf16.mxu0 0
        %1159 = vmatpush1.bf16.xpose.msra.mxu0 0
        %1160 = vmatprep.subr.bf16.mxu0 0
        %1161 = vmatpush1.bf16.xpose.msra.mxu0 0
        %1162 = vmatprep.subr.bf16.mxu0 0
        %1163 = vmatpush1.bf16.xpose.msra.mxu0 0
        %1164 = vmatprep.subr.bf16.mxu0 0
        %1165 = vmatpush1.bf16.xpose.msra.mxu0 0
        %1166 = vmatprep.subr.bf16.mxu0 0
        %1167 = vmatpush1.bf16.xpose.msra.mxu0 0
        %1168 = vmatprep.subr.bf16.mxu0 0
        %1169 = vmatpush1.bf16.xpose.msra.mxu0 0
        %1170 = vmatprep.subr.bf16.mxu0 0
        %1171 = vmatpush1.bf16.xpose.msra.mxu0 0
        %1172 = vmatprep.subr.bf16.mxu0 0
        %1173 = vmatpush1.bf16.xpose.msra.mxu0 0
        %1174 = vmatprep.subr.bf16.mxu0 0
        %1175 = vmatpush1.bf16.xpose.msra.mxu0 0
        %1176 = vmatprep.mubr.bf16.mxu0 0
        %1177 = vmatmul.mubr.bf16.gmra.mrb[0].mxu0 %v1139
        %v1178 = vpop.f32.mrb[0].mxu0
        %v1179 = vadd.f32 0.0, %v1178
        %v1180 = vpop.f32.mrb[0].mxu0
        %v1181 = vpop.f32.mrb[0].mxu0
        %v1182 = vpop.f32.mrb[0].mxu0
        %1183 = vdwg.mxu0
        %v1184 = vmul.f32 %v1179, 0.35355338
        %v1185 = vadd.f32 %v1184, %v956
        %v1186 = vsel %vm904, %v1185, -inf
        %1187 = vmax.xlane.f32.xlu0 %v1186
        %v1188 = vpop.xlane.xlu0 %1187
        %v1189 = vsub.f32 %v1185, %v1188
        %v1190 = vmul.f32 %v1189, 1.442695
        %v1191 = vpow.pop %v1190
        %v1192 = vsel %vm904, %v1191, 0.0
        %1193 = vadd.xlane.f32.xlu0 %v1192
        %v1194 = vpop.xlane.xlu0 %1193
        %v1195 = vrcp.pop %v1194
        %v1196 = vmul.f32 %v1191, %v1195
        %v1197 = vpack.c.bf16 %v1196, %v1196
        %1198 = vrot.lane.b32.xlu0 %v899, 48
        %v1199 = vpop.permute.xlu0 %1198
        %v1201 = vsel %vm904, %v1197, 0
        %v1204 = vsel %vm976, %v1199, 0
        %1206 = vmatprep.subr.bf16.mxu0 0
        %1207 = vmatpush1.bf16.msra.mxu0 %v1204
        %1208 = vmatprep.subr.bf16.mxu0 0
        %1209 = vmatpush1.bf16.msra.mxu0 0
        %1210 = vmatprep.subr.bf16.mxu0 0
        %1211 = vmatpush1.bf16.msra.mxu0 0
        %1212 = vmatprep.subr.bf16.mxu0 0
        %1213 = vmatpush1.bf16.msra.mxu0 0
        %1214 = vmatprep.subr.bf16.mxu0 0
        %1215 = vmatpush1.bf16.msra.mxu0 0
        %1216 = vmatprep.subr.bf16.mxu0 0
        %1217 = vmatpush1.bf16.msra.mxu0 0
        %1218 = vmatprep.subr.bf16.mxu0 0
        %1219 = vmatpush1.bf16.msra.mxu0 0
        %1220 = vmatprep.subr.bf16.mxu0 0
        %1221 = vmatpush1.bf16.msra.mxu0 0
        %1222 = vmatprep.subr.bf16.mxu0 0
        %1223 = vmatpush1.bf16.msra.mxu0 0
        %1224 = vmatprep.subr.bf16.mxu0 0
        %1225 = vmatpush1.bf16.msra.mxu0 0
        %1226 = vmatprep.subr.bf16.mxu0 0
        %1227 = vmatpush1.bf16.msra.mxu0 0
        %1228 = vmatprep.subr.bf16.mxu0 0
        %1229 = vmatpush1.bf16.msra.mxu0 0
        %1230 = vmatprep.subr.bf16.mxu0 0
        %1231 = vmatpush1.bf16.msra.mxu0 0
        %1232 = vmatprep.subr.bf16.mxu0 0
        %1233 = vmatpush1.bf16.msra.mxu0 0
        %1234 = vmatprep.subr.bf16.mxu0 0
        %1235 = vmatpush1.bf16.msra.mxu0 0
        %1236 = vmatprep.subr.bf16.mxu0 0
        %1237 = vmatpush1.bf16.msra.mxu0 0
        %1238 = vmatprep.mubr.bf16.mxu0 0
        %1239 = vmatmul.mubr.bf16.gmra.mrb[0].mxu0 %v1201
        %v1240 = vpop.f32.mrb[0].mxu0
        %v1241 = vadd.f32 0.0, %v1240
        %v1242 = vpop.f32.mrb[0].mxu0
        %v1243 = vpop.f32.mrb[0].mxu0
        %v1244 = vpop.f32.mrb[0].mxu0
        %1245 = vdwg.mxu0
        %v1246 = vpack.c.bf16 %v1241, %v1241
        %1247 = vrot.lane.b32.xlu0 %v899, 104
        %v1248 = vpop.permute.xlu0 %1247
        %1249 = vrot.lane.b32.xlu0 %v899, 72
        %v1250 = vpop.permute.xlu0 %1249
        %v1252 = vsel %vm904, %v1248, 0
        %v1255 = vsel %vm904, %v1250, 0
        %1257 = vmatprep.subr.bf16.mxu0 0
        %1258 = vmatpush1.bf16.xpose.msra.mxu0 %v1255
        %1259 = vmatprep.subr.bf16.mxu0 0
        %1260 = vmatpush1.bf16.xpose.msra.mxu0 0
        %1261 = vmatprep.subr.bf16.mxu0 0
        %1262 = vmatpush1.bf16.xpose.msra.mxu0 0
        %1263 = vmatprep.subr.bf16.mxu0 0
        %1264 = vmatpush1.bf16.xpose.msra.mxu0 0
        %1265 = vmatprep.subr.bf16.mxu0 0
        %1266 = vmatpush1.bf16.xpose.msra.mxu0 0
        %1267 = vmatprep.subr.bf16.mxu0 0
        %1268 = vmatpush1.bf16.xpose.msra.mxu0 0
        %1269 = vmatprep.subr.bf16.mxu0 0
        %1270 = vmatpush1.bf16.xpose.msra.mxu0 0
        %1271 = vmatprep.subr.bf16.mxu0 0
        %1272 = vmatpush1.bf16.xpose.msra.mxu0 0
        %1273 = vmatprep.subr.bf16.mxu0 0
        %1274 = vmatpush1.bf16.xpose.msra.mxu0 0
        %1275 = vmatprep.subr.bf16.mxu0 0
        %1276 = vmatpush1.bf16.xpose.msra.mxu0 0
        %1277 = vmatprep.subr.bf16.mxu0 0
        %1278 = vmatpush1.bf16.xpose.msra.mxu0 0
        %1279 = vmatprep.subr.bf16.mxu0 0
        %1280 = vmatpush1.bf16.xpose.msra.mxu0 0
        %1281 = vmatprep.subr.bf16.mxu0 0
        %1282 = vmatpush1.bf16.xpose.msra.mxu0 0
        %1283 = vmatprep.subr.bf16.mxu0 0
        %1284 = vmatpush1.bf16.xpose.msra.mxu0 0
        %1285 = vmatprep.subr.bf16.mxu0 0
        %1286 = vmatpush1.bf16.xpose.msra.mxu0 0
        %1287 = vmatprep.subr.bf16.mxu0 0
        %1288 = vmatpush1.bf16.xpose.msra.mxu0 0
        %1289 = vmatprep.mubr.bf16.mxu0 0
        %1290 = vmatmul.mubr.bf16.gmra.mrb[0].mxu0 %v1252
        %v1291 = vpop.f32.mrb[0].mxu0
        %v1292 = vadd.f32 0.0, %v1291
        %v1293 = vpop.f32.mrb[0].mxu0
        %v1294 = vpop.f32.mrb[0].mxu0
        %v1295 = vpop.f32.mrb[0].mxu0
        %1296 = vdwg.mxu0
        %v1297 = vmul.f32 %v1292, 0.35355338
        %v1298 = vadd.f32 %v1297, %v956
        %v1299 = vsel %vm904, %v1298, -inf
        %1300 = vmax.xlane.f32.xlu0 %v1299
        %v1301 = vpop.xlane.xlu0 %1300
        %v1302 = vsub.f32 %v1298, %v1301
        %v1303 = vmul.f32 %v1302, 1.442695
        %v1304 = vpow.pop %v1303
        %v1305 = vsel %vm904, %v1304, 0.0
        %1306 = vadd.xlane.f32.xlu0 %v1305
        %v1307 = vpop.xlane.xlu0 %1306
        %v1308 = vrcp.pop %v1307
        %v1309 = vmul.f32 %v1304, %v1308
        %v1310 = vpack.c.bf16 %v1309, %v1309
        %1311 = vrot.lane.b32.xlu0 %v899, 40
        %v1312 = vpop.permute.xlu0 %1311
        %v1314 = vsel %vm904, %v1310, 0
        %v1317 = vsel %vm976, %v1312, 0
        %1319 = vmatprep.subr.bf16.mxu0 0
        %1320 = vmatpush1.bf16.msra.mxu0 %v1317
        %1321 = vmatprep.subr.bf16.mxu0 0
        %1322 = vmatpush1.bf16.msra.mxu0 0
        %1323 = vmatprep.subr.bf16.mxu0 0
        %1324 = vmatpush1.bf16.msra.mxu0 0
        %1325 = vmatprep.subr.bf16.mxu0 0
        %1326 = vmatpush1.bf16.msra.mxu0 0
        %1327 = vmatprep.subr.bf16.mxu0 0
        %1328 = vmatpush1.bf16.msra.mxu0 0
        %1329 = vmatprep.subr.bf16.mxu0 0
        %1330 = vmatpush1.bf16.msra.mxu0 0
        %1331 = vmatprep.subr.bf16.mxu0 0
        %1332 = vmatpush1.bf16.msra.mxu0 0
        %1333 = vmatprep.subr.bf16.mxu0 0
        %1334 = vmatpush1.bf16.msra.mxu0 0
        %1335 = vmatprep.subr.bf16.mxu0 0
        %1336 = vmatpush1.bf16.msra.mxu0 0
        %1337 = vmatprep.subr.bf16.mxu0 0
        %1338 = vmatpush1.bf16.msra.mxu0 0
        %1339 = vmatprep.subr.bf16.mxu0 0
        %1340 = vmatpush1.bf16.msra.mxu0 0
        %1341 = vmatprep.subr.bf16.mxu0 0
        %1342 = vmatpush1.bf16.msra.mxu0 0
        %1343 = vmatprep.subr.bf16.mxu0 0
        %1344 = vmatpush1.bf16.msra.mxu0 0
        %1345 = vmatprep.subr.bf16.mxu0 0
        %1346 = vmatpush1.bf16.msra.mxu0 0
        %1347 = vmatprep.subr.bf16.mxu0 0
        %1348 = vmatpush1.bf16.msra.mxu0 0
        %1349 = vmatprep.subr.bf16.mxu0 0
        %1350 = vmatpush1.bf16.msra.mxu0 0
        %1351 = vmatprep.mubr.bf16.mxu0 0
        %1352 = vmatmul.mubr.bf16.gmra.mrb[0].mxu0 %v1314
        %v1353 = vpop.f32.mrb[0].mxu0
        %v1354 = vadd.f32 0.0, %v1353
        %v1355 = vpop.f32.mrb[0].mxu0
        %v1356 = vpop.f32.mrb[0].mxu0
        %v1357 = vpop.f32.mrb[0].mxu0
        %1358 = vdwg.mxu0
        %v1359 = vpack.c.bf16 %v1354, %v1354
        %1361 = vrot.lane.b32.xlu0 %v1133, 8
        %v1362 = vpop.permute.xlu0 %1361
        %1364 = vrot.lane.b32.xlu0 %v1246, 16
        %v1365 = vpop.permute.xlu0 %1364
        %1367 = vrot.lane.b32.xlu0 %v1359, 24
        %v1368 = vpop.permute.xlu0 %1367
        %v1371 = vsel %vm904, %v1020, %v1362
        %vm1372 = vcmask 130048
        %v1374 = vsel %vm1372, %v1371, %v1365
        %vm1375 = vcmask 195584
        %v1377 = vsel %vm1375, %v1374, %v1368
        %v1378 = vld [vmem:[%s730] sm:$0xf]
        %v1379 = vld [vmem:[%s730 + $0x4] sm:$0xf]
        %v1380 = vld [vmem:[%s730 + $0x8] sm:$0xf]
        %v1381 = vld [vmem:[%s730 + $0xc] sm:$0xf]
        %v1382 = vld [vmem:[%s733] sm:$0x1]
        %v1384 = vlaneseq
        %v1385 = vshrl.u32 %v1384, 7
        %v1386 = vsub.s32 0, %v1385
        %v1387 = vrot.slane %v1382, %v1386
        %v1393 = vunpack.c.l.b16 %v1378
        %v1394 = vunpack.c.l.b16 %v1379
        %v1395 = vunpack.c.l.b16 %v1380
        %v1396 = vunpack.c.l.b16 %v1381
        %v1397 = vpack.c.b16 %v1394, %v1393
        %v1398 = vpack.c.b16 %v1396, %v1395
        %v1401 = vsel %vm855, %v1377, 0
        %1403 = vmatprep.subr.bf16.mxu0 0
        %1404 = vmatpush1.bf16.msra.mxu0 %v1397
        %1405 = vmatprep.subr.bf16.mxu0 0
        %1406 = vmatpush1.bf16.msra.mxu0 %v1398
        %1407 = vmatprep.subr.bf16.mxu0 0
        %1408 = vmatpush1.bf16.msra.mxu0 0
        %1409 = vmatprep.subr.bf16.mxu0 0
        %1410 = vmatpush1.bf16.msra.mxu0 0
        %1411 = vmatprep.subr.bf16.mxu0 0
        %1412 = vmatpush1.bf16.msra.mxu0 0
        %1413 = vmatprep.subr.bf16.mxu0 0
        %1414 = vmatpush1.bf16.msra.mxu0 0
        %1415 = vmatprep.subr.bf16.mxu0 0
        %1416 = vmatpush1.bf16.msra.mxu0 0
        %1417 = vmatprep.subr.bf16.mxu0 0
        %1418 = vmatpush1.bf16.msra.mxu0 0
        %1419 = vmatprep.subr.bf16.mxu0 0
        %1420 = vmatpush1.bf16.msra.mxu0 0
        %1421 = vmatprep.subr.bf16.mxu0 0
        %1422 = vmatpush1.bf16.msra.mxu0 0
        %1423 = vmatprep.subr.bf16.mxu0 0
        %1424 = vmatpush1.bf16.msra.mxu0 0
        %1425 = vmatprep.subr.bf16.mxu0 0
        %1426 = vmatpush1.bf16.msra.mxu0 0
        %1427 = vmatprep.subr.bf16.mxu0 0
        %1428 = vmatpush1.bf16.msra.mxu0 0
        %1429 = vmatprep.subr.bf16.mxu0 0
        %1430 = vmatpush1.bf16.msra.mxu0 0
        %1431 = vmatprep.subr.bf16.mxu0 0
        %1432 = vmatpush1.bf16.msra.mxu0 0
        %1433 = vmatprep.subr.bf16.mxu0 0
        %1434 = vmatpush1.bf16.msra.mxu0 0
        %1435 = vmatprep.mubr.bf16.mxu0 0
        %1436 = vmatmul.mubr.bf16.gmra.mrb[0].mxu0 %v1401
        %v1437 = vpop.f32.mrb[0].mxu0
        %v1438 = vadd.f32 %v1387, %v1437
        %v1439 = vpop.f32.mrb[0].mxu0
        %v1440 = vpop.f32.mrb[0].mxu0
        %v1441 = vpop.f32.mrb[0].mxu0
        %1442 = vdwg.mxu0
        %v1443 = vadd.f32 %v830, %v1438
        %v1444 = vsel %vm855, %v1443, 0.0
        %1445 = vadd.xlane.f32.xlu0 %v1444
        %v1446 = vpop.xlane.xlu0 %1445
        %v1447 = vrcp.pop 32.0
        %v1448 = vmul.f32 %v1446, %v1447
        %v1449 = vsub.f32 %v1443, %v1448
        %v1450 = vmul.f32 %v1449, %v1449
        %v1451 = vsel %vm855, %v1450, 0.0
        %1452 = vadd.xlane.f32.xlu0 %v1451
        %v1453 = vpop.xlane.xlu0 %1452
        %v1454 = vmul.f32 %v1453, %v1447
        %v1455 = vadd.f32 %v1454, 1e-05
        %v1456 = vrsqrt.pop %v1455
        %v1457 = vmul.f32 %v1449, %v1456
        %v1458 = vld [vmem:[%s736] sm:$0x1]
        %v1460 = vlaneseq
        %v1461 = vshrl.u32 %v1460, 7
        %v1462 = vsub.s32 0, %v1461
        %v1463 = vrot.slane %v1458, %v1462
        %v1465 = vmul.f32 %v1457, %v1463
        %v1466 = vld [vmem:[%s739] sm:$0x1]
        %v1468 = vlaneseq
        %v1469 = vshrl.u32 %v1468, 7
        %v1470 = vsub.s32 0, %v1469
        %v1471 = vrot.slane %v1466, %v1470
        %v1473 = vadd.f32 %v1465, %v1471
        %v1474 = vpack.c.bf16 %v1473, %v1473
        %v1475 = vld [vmem:[%s744] sm:$0xf]
        %v1476 = vld [vmem:[%s744 + $0x4] sm:$0xf]
        %v1477 = vld [vmem:[%s744 + $0x8] sm:$0xf]
        %v1478 = vld [vmem:[%s744 + $0xc] sm:$0xf]
        %v1479 = vld [vmem:[%s747] sm:$0x1]
        %v1481 = vlaneseq
        %v1482 = vshrl.u32 %v1481, 7
        %v1483 = vsub.s32 0, %v1482
        %v1484 = vrot.slane %v1479, %v1483
        %v1490 = vunpack.c.l.b16 %v1475
        %v1491 = vunpack.c.l.b16 %v1476
        %v1492 = vunpack.c.l.b16 %v1477
        %v1493 = vunpack.c.l.b16 %v1478
        %v1494 = vpack.c.b16 %v1491, %v1490
        %v1495 = vpack.c.b16 %v1493, %v1492
        %v1499 = vsel %vm855, %v1474, 0
        %1501 = vmatprep.subr.bf16.mxu0 0
        %1502 = vmatpush1.bf16.msra.mxu0 %v1494
        %1503 = vmatprep.subr.bf16.mxu0 0
        %1504 = vmatpush1.bf16.msra.mxu0 %v1495
        %1505 = vmatprep.subr.bf16.mxu0 0
        %1506 = vmatpush1.bf16.msra.mxu0 0
        %1507 = vmatprep.subr.bf16.mxu0 0
        %1508 = vmatpush1.bf16.msra.mxu0 0
        %1509 = vmatprep.subr.bf16.mxu0 0
        %1510 = vmatpush1.bf16.msra.mxu0 0
        %1511 = vmatprep.subr.bf16.mxu0 0
        %1512 = vmatpush1.bf16.msra.mxu0 0
        %1513 = vmatprep.subr.bf16.mxu0 0
        %1514 = vmatpush1.bf16.msra.mxu0 0
        %1515 = vmatprep.subr.bf16.mxu0 0
        %1516 = vmatpush1.bf16.msra.mxu0 0
        %1517 = vmatprep.subr.bf16.mxu0 0
        %1518 = vmatpush1.bf16.msra.mxu0 0
        %1519 = vmatprep.subr.bf16.mxu0 0
        %1520 = vmatpush1.bf16.msra.mxu0 0
        %1521 = vmatprep.subr.bf16.mxu0 0
        %1522 = vmatpush1.bf16.msra.mxu0 0
        %1523 = vmatprep.subr.bf16.mxu0 0
        %1524 = vmatpush1.bf16.msra.mxu0 0
        %1525 = vmatprep.subr.bf16.mxu0 0
        %1526 = vmatpush1.bf16.msra.mxu0 0
        %1527 = vmatprep.subr.bf16.mxu0 0
        %1528 = vmatpush1.bf16.msra.mxu0 0
        %1529 = vmatprep.subr.bf16.mxu0 0
        %1530 = vmatpush1.bf16.msra.mxu0 0
        %1531 = vmatprep.subr.bf16.mxu0 0
        %1532 = vmatpush1.bf16.msra.mxu0 0
        %1533 = vmatprep.mubr.bf16.mxu0 0
        %1534 = vmatmul.mubr.bf16.gmra.mrb[0].mxu0 %v1499
        %v1535 = vpop.f32.mrb[0].mxu0
        %v1536 = vadd.f32 %v1484, %v1535
        %v1537 = vpop.f32.mrb[0].mxu0
        %v1538 = vpop.f32.mrb[0].mxu0
        %v1539 = vpop.f32.mrb[0].mxu0
        %1540 = vdwg.mxu0
        %v1541 = vmax.f32 %v1536, 0.0
        %v1542 = vpack.c.bf16 %v1541, %v1541
        %v1543 = vld [vmem:[%s752] sm:$0xf]
        %v1544 = vld [vmem:[%s752 + $0x4] sm:$0xf]
        %v1545 = vld [vmem:[%s752 + $0x8] sm:$0xf]
        %v1546 = vld [vmem:[%s752 + $0xc] sm:$0xf]
        %v1547 = vld [vmem:[%s752 + $0x10] sm:$0xf]
        %v1548 = vld [vmem:[%s752 + $0x14] sm:$0xf]
        %v1549 = vld [vmem:[%s752 + $0x18] sm:$0xf]
        %v1550 = vld [vmem:[%s752 + $0x1c] sm:$0xf]
        %v1551 = vld [vmem:[%s755] sm:$0x1]
        %v1553 = vlaneseq
        %v1554 = vshrl.u32 %v1553, 7
        %v1555 = vsub.s32 0, %v1554
        %v1556 = vrot.slane %v1551, %v1555
        %v1566 = vunpack.c.l.b16 %v1543
        %v1567 = vunpack.c.l.b16 %v1544
        %v1568 = vunpack.c.l.b16 %v1545
        %v1569 = vunpack.c.l.b16 %v1546
        %v1570 = vunpack.c.l.b16 %v1547
        %v1571 = vunpack.c.l.b16 %v1548
        %v1572 = vunpack.c.l.b16 %v1549
        %v1573 = vunpack.c.l.b16 %v1550
        %v1574 = vpack.c.b16 %v1567, %v1566
        %v1575 = vpack.c.b16 %v1569, %v1568
        %v1576 = vpack.c.b16 %v1571, %v1570
        %v1577 = vpack.c.b16 %v1573, %v1572
        %vm1582 = vcmask 523264
        %v1584 = vsel %vm1582, %v1542, 0
        %1586 = vmatprep.subr.bf16.mxu0 0
        %1587 = vmatpush1.bf16.msra.mxu0 %v1574
        %1588 = vmatprep.subr.bf16.mxu0 0
        %1589 = vmatpush1.bf16.msra.mxu0 %v1575
        %1590 = vmatprep.subr.bf16.mxu0 0
        %1591 = vmatpush1.bf16.msra.mxu0 %v1576
        %1592 = vmatprep.subr.bf16.mxu0 0
        %1593 = vmatpush1.bf16.msra.mxu0 %v1577
        %1594 = vmatprep.subr.bf16.mxu0 0
        %1595 = vmatpush1.bf16.msra.mxu0 0
        %1596 = vmatprep.subr.bf16.mxu0 0
        %1597 = vmatpush1.bf16.msra.mxu0 0
        %1598 = vmatprep.subr.bf16.mxu0 0
        %1599 = vmatpush1.bf16.msra.mxu0 0
        %1600 = vmatprep.subr.bf16.mxu0 0
        %1601 = vmatpush1.bf16.msra.mxu0 0
        %1602 = vmatprep.subr.bf16.mxu0 0
        %1603 = vmatpush1.bf16.msra.mxu0 0
        %1604 = vmatprep.subr.bf16.mxu0 0
        %1605 = vmatpush1.bf16.msra.mxu0 0
        %1606 = vmatprep.subr.bf16.mxu0 0
        %1607 = vmatpush1.bf16.msra.mxu0 0
        %1608 = vmatprep.subr.bf16.mxu0 0
        %1609 = vmatpush1.bf16.msra.mxu0 0
        %1610 = vmatprep.subr.bf16.mxu0 0
        %1611 = vmatpush1.bf16.msra.mxu0 0
        %1612 = vmatprep.subr.bf16.mxu0 0
        %1613 = vmatpush1.bf16.msra.mxu0 0
        %1614 = vmatprep.subr.bf16.mxu0 0
        %1615 = vmatpush1.bf16.msra.mxu0 0
        %1616 = vmatprep.subr.bf16.mxu0 0
        %1617 = vmatpush1.bf16.msra.mxu0 0
        %1618 = vmatprep.mubr.bf16.mxu0 0
        %1619 = vmatmul.mubr.bf16.gmra.mrb[0].mxu0 %v1584
        %v1620 = vpop.f32.mrb[0].mxu0
        %v1621 = vadd.f32 %v1556, %v1620
        %v1622 = vpop.f32.mrb[0].mxu0
        %v1623 = vpop.f32.mrb[0].mxu0
        %v1624 = vpop.f32.mrb[0].mxu0
        %1625 = vdwg.mxu0
        %v1626 = vadd.f32 %v1473, %v1621
        %v1627 = vsel %vm855, %v1626, 0.0
        %1628 = vadd.xlane.f32.xlu0 %v1627
        %v1629 = vpop.xlane.xlu0 %1628
        %v1630 = vmul.f32 %v1629, %v1447
        %v1631 = vsub.f32 %v1626, %v1630
        %v1632 = vmul.f32 %v1631, %v1631
        %v1633 = vsel %vm855, %v1632, 0.0
        %1634 = vadd.xlane.f32.xlu0 %v1633
        %v1635 = vpop.xlane.xlu0 %1634
        %v1636 = vmul.f32 %v1635, %v1447
        %v1637 = vadd.f32 %v1636, 1e-05
        %v1638 = vrsqrt.pop %v1637
        %v1639 = vmul.f32 %v1631, %v1638
        %v1640 = vld [vmem:[%s758] sm:$0x1]
        %v1642 = vlaneseq
        %v1643 = vshrl.u32 %v1642, 7
        %v1644 = vsub.s32 0, %v1643
        %v1645 = vrot.slane %v1640, %v1644
        %v1647 = vmul.f32 %v1639, %v1645
        %v1648 = vld [vmem:[%s761] sm:$0x1]
        %v1650 = vlaneseq
        %v1651 = vshrl.u32 %v1650, 7
        %v1652 = vsub.s32 0, %v1651
        %v1653 = vrot.slane %v1648, %v1652
        %v1655 = vadd.f32 %v1647, %v1653
        %1656 = vst.msk [vmem:[#allocation2] sm:$0xff] %vm855, %v1655
        %p1657 = scmp.eq.s32.totalorder %s36, 1
        // Predicated region
        $region93: #{tpu_custom_call.1} parent=87 // pred_check
          %p1658 = pneg %p1657
        $region94: #{tpu_custom_call.1} parent=87 // pred_check_branch
          %1660 = sbr.rel (%p1658) target = $region96
        $region95: #{tpu_custom_call.1} parent=87 // pred_region
          %1661 = vst.msk [vmem:[%s710] sm:$0xff] %vm855, %v1655
        $region96: #{tpu_custom_call.1} parent=87 // pred_fallthru
          _
        %s1662 = sand.u32 %s478, 1
        %s1663 = scalar_lea.sflag [#allocation4], %s1662
        %s1664 = sand.u32 %s478, 1
        %s1665 = smul.addr %s1664, 8
        %s1666 = scalar_lea.vmem [#allocation3], %s1665
        // Predicated region
        $region97: #{tpu_custom_call.1} parent=87 // pred_check
          %p1667 = pneg %p488
        $region98: #{tpu_custom_call.1} parent=87 // pred_check_branch
          %1669 = sbr.rel (%p1667) target = $region100
        $region99: #{tpu_custom_call.1} parent=87 // pred_region
          %s1671 = ssub.s32 128, 128
          %1672 = vsyncadd %s1663, %s1671
          %s1673 = smul.addr %s35, 128
          %s1674 = scalar_lea.hbm %s17, %s1673
          %s1676 = sshll.u32 %s1666, 4
          %s1677 = int_to_ptr.vmem [resolvable:$true] %s1676
          %1679 = dma.vmem_to_hbm [thread:$0]  %s1677, 128, %s1674, %s1663
        $region100: #{tpu_custom_call.1} parent=87 // pred_fallthru
          _
      $region88: #{tpu_custom_call.1} parent=5 // pred_fallthru
        _
      %p1680 = scmp.le.s32.totalorder 2, %s26
      // Predicated region
      $region101: #{tpu_custom_call.1} parent=5 // pred_check
        %p1681 = pneg %p1680
      $region102: #{tpu_custom_call.1} parent=5 // pred_check_branch
        %1683 = sbr.rel (%p1681) target = $region104
      $region103: #{tpu_custom_call.1} parent=5 // pred_region
        %s1684 = ssub.s32 %s26, 2
        // Predicated region
        $region105: #{tpu_custom_call.1} parent=103 // pred_check
          %p1685 = pneg %p494
        $region106: #{tpu_custom_call.1} parent=103 // pred_check_branch
          %1687 = sbr.rel (%p1685) target = $region108
        $region107: #{tpu_custom_call.1} parent=103 // pred_region
          %s1688 = sand.u32 %s479, 1
          %s1689 = scalar_lea.sflag [#allocation4], %s1688
          %s1690 = sand.u32 %s479, 1
          %s1691 = smul.addr %s1690, 8
          %s1692 = scalar_lea.vmem [#allocation3], %s1691
          %1693 = dma.done %s1689, 128
        $region108: #{tpu_custom_call.1} parent=103 // pred_fallthru
          _
      $region104: #{tpu_custom_call.1} parent=5 // pred_fallthru
        _
    $region6: #{tpu_custom_call.1} parent=1 // loop_footer
      %s30 = sadd.s32 1, %s26
    $region7: #{tpu_custom_call.1} parent=1 // loop_footer_branch
      %25 = sbr.rel target = $region3
    $region8: #{tpu_custom_call.1} parent=1 // loop_exit
      _
    %1694 = vsyncpa [#allocation4], 1
    %s1695 = scalar_lea.sflag [#allocation4], 1
    %1696 = vsyncpa %s1695, 1

</llo_original>
